<compile_context>
chip_gen: v6e
topology: v6e:2x2x1
jax: 0.10.0
libtpu: 0.0.40
codegen_flags: <defaults>
</compile_context>

<pallas_src>
import jax
import jax.numpy as jnp
from jax import lax
from jax.experimental import pallas as pl
from jax.experimental.pallas import tpu as pltpu


# --------------------------------------------------------------------------
# Kernel
# --------------------------------------------------------------------------
def _downsample_conv_kernel(xe_ref, xo_ref, w_ref, b_ref, o_ref, lhs_ref):
    """One (batch, row-tile) block of Conv2d(C, C, k=3, s=2, p=1).

    xe_ref : (TR+1, Wo+1, 2C) even row phase (padded rows 2g) with 1-row halo.
    xo_ref : (TR,   Wo+1, 2C) odd  row phase (padded rows 2g+1).
    w_ref  : (9C, Cop)  weight rows ordered (kh, kw, cin); Cout padded to 128.
    b_ref  : (1, Cop)   f32 bias (padded).
    o_ref  : (TR*Wo, Cop) output tile (lane-dense Cop).
    lhs_ref: (TR*Wo, 9C) VMEM scratch: fused im2col LHS for a single MXU dot.

    Column packing: packed col p holds the channels of padded cols (2p, 2p+1)
    as [even C | odd C].  For output col j:
      kw=0,1 -> the full 2C of packed col j       (xk[:, :Wo, :])
      kw=2   -> even phase of packed col j+1      (xk[:, 1:, :C])
    Row phases: kh=0 -> even rows [0,TR); kh=1 -> odd rows; kh=2 -> even rows
    [1,TR+1) (the halo row covers the tile edge).
    """
    tr1, wo1, c2 = xe_ref.shape
    tr, wo, c = tr1 - 1, wo1 - 1, c2 // 2
    t = tr * wo

    xe = xe_ref[...]                       # (TR+1, Wo+1, 2C)
    xo = xo_ref[...]                       # (TR,   Wo+1, 2C)

    # Build the fused LHS (T, 9C); column order matches the (kh, kw, cin)
    # ordering of the weight rows, so a single K=9C dot does the whole conv.
    lhs_ref[:, 0 * c:2 * c] = xe[:tr, :wo, :].reshape(t, 2 * c)   # kh=0, kw=0,1
    lhs_ref[:, 2 * c:3 * c] = xe[:tr, 1:, :c].reshape(t, c)       # kh=0, kw=2
    lhs_ref[:, 3 * c:5 * c] = xo[:, :wo, :].reshape(t, 2 * c)     # kh=1, kw=0,1
    lhs_ref[:, 5 * c:6 * c] = xo[:, 1:, :c].reshape(t, c)         # kh=1, kw=2
    lhs_ref[:, 6 * c:8 * c] = xe[1:, :wo, :].reshape(t, 2 * c)    # kh=2, kw=0,1
    lhs_ref[:, 8 * c:9 * c] = xe[1:, 1:, :c].reshape(t, c)        # kh=2, kw=2

    # One MXU dot, K accumulated inside the MXU (no VPU acc read-modify-write).
    acc = jnp.dot(lhs_ref[...], w_ref[...], preferred_element_type=jnp.float32)
    o_ref[...] = (acc + b_ref[...]).astype(o_ref.dtype)


# --------------------------------------------------------------------------
# Tiling / VMEM heuristics
# --------------------------------------------------------------------------
def _vmem_capacity_bytes():
    """Physical VMEM per TensorCore; conservative 64 MiB (v7x) fallback."""
    try:
        info = pltpu.get_tpu_info()
        for name in ("vmem_capacity_bytes", "vmem_size_bytes", "vmem_bytes"):
            cap = getattr(info, name, None)
            if cap:
                return int(cap)
    except Exception:
        pass
    return 64 * 1024 * 1024


def _vmem_estimate(tr, wo, c, cop, in_isz, out_isz):
    """Per-step VMEM bytes: resident weights/bias + double-buffered blocks +
    in-kernel temporaries (fused-LHS scratch, f32 dot result)."""
    resident = 9 * c * cop * in_isz + cop * 4
    blocks = 2 * ((tr + 1) * (wo + 1) * 2 * c * in_isz      # even-phase block
                  + tr * (wo + 1) * 2 * c * in_isz          # odd-phase block
                  + tr * wo * cop * out_isz)                # output block
    temps = tr * wo * (9 * c * in_isz + cop * 4)
    return resident + blocks + temps


def _pick_row_tile(batch, ho, wo, c, cop, in_isz, out_isz, budget_bytes,
                   min_steps=2):
    """Largest divisor of Ho whose blocks fit `budget_bytes`, preferring
    >= min_steps total grid steps (megacore / v7x 2-TC) and an MXU-aligned
    M = TR*Wo when that does not shrink the tile by more than 2x."""
    divisors = [d for d in range(1, ho + 1)
                if ho % d == 0 and ((d * wo) % 8 == 0 or d == ho)]
    fitting = [d for d in divisors
               if _vmem_estimate(d, wo, c, cop, in_isz, out_isz) <= budget_bytes]
    fitting = fitting or [min(divisors)]
    cands = [d for d in fitting if batch * (ho // d) >= min_steps] or fitting
    best = max(cands)
    for mult in (256, 128):
        aligned = [d for d in cands if (d * wo) % mult == 0]
        if aligned and 2 * max(aligned) >= best:
            return max(aligned)
    return best


# --------------------------------------------------------------------------
# Wrapper
# --------------------------------------------------------------------------
def downsample_conv(x_nchw, weight, bias, *, compute_dtype=jnp.bfloat16,
                    row_tile=None):
    """Conv2d(C, C, kernel_size=3, stride=2, padding=1) on NCHW input.

    compute_dtype: MXU operand dtype (default bf16; accumulation and bias are
    always f32, the result is cast back to the input dtype)."""
    B, C, H, W = x_nchw.shape
    # The PyTorch module asserts out.shape == (B, C, H//2, W//2); that only
    # holds for even H, W, so make the requirement explicit.
    assert H % 2 == 0 and W % 2 == 0, "DownSample requires even spatial dims"
    Ho, Wo = H // 2, W // 2
    out_dtype = x_nchw.dtype
    cdtype = jnp.dtype(compute_dtype) if compute_dtype is not None else jnp.dtype(out_dtype)
    Cop = ((C + 127) // 128) * 128            # lane-dense output channels
    in_isz = jnp.dtype(cdtype).itemsize
    out_isz = jnp.dtype(out_dtype).itemsize

    # Generation-aware VMEM budget (~90 MiB on 128 MiB v5e/v6e, ~45 MiB on v7x).
    cap = _vmem_capacity_bytes()
    budget = min(int(0.70 * cap), cap - (8 << 20))

    if row_tile is None:
        TR = _pick_row_tile(B, Ho, Wo, C, Cop, in_isz, out_isz, budget)
    else:
        TR = int(row_tile)
        assert Ho % TR == 0 and ((TR * Wo) % 8 == 0 or TR == Ho)
    NT = Ho // TR

    est = _vmem_estimate(TR, Wo, C, Cop, in_isz, out_isz)
    vmem_limit = int(min(max(int(est * 1.3) + (2 << 20), 16 << 20),
                         int(0.92 * cap)))

    # ---- layout glue (~1.0x of the padded input; kept NCHW at the interface
    # to match PyTorch -- NHWC-native callers could skip both transposes) ----
    x = jnp.transpose(x_nchw, (0, 2, 3, 1)).astype(cdtype)        # NHWC
    xp = jnp.pad(x, ((0, 0), (1, 1), (1, 1), (0, 0)))             # (B, 2Ho+2, 2Wo+2, C)

    # Even row phase (padded rows 2g), pre-tiled with a 1-row halo so a single
    # operand serves both kh=0 and kh=2; width regrouped as (Wo+1, 2C) so the
    # (even col, odd col) channel pair of each packed column is lane-adjacent.
    row_ids = (jnp.arange(NT)[:, None] * TR + jnp.arange(TR + 1)[None, :]).reshape(-1)
    x_even_t = xp[:, 2 * row_ids].reshape(B, NT, TR + 1, Wo + 1, 2 * C)
    # Odd row phase (padded rows 2g+1), kh=1.
    x_odd = xp[:, 1:2 * Ho:2].reshape(B, Ho, Wo + 1, 2 * C)

    # PyTorch weight (Cout, Cin, kh, kw) -> rows ordered (kh, kw, cin), Cout padded.
    w2 = jnp.transpose(weight, (2, 3, 1, 0)).reshape(9 * C, C)
    w2 = jnp.pad(w2, ((0, 0), (0, Cop - C))).astype(cdtype)
    b2 = jnp.pad(bias.astype(jnp.float32), (0, Cop - C)).reshape(1, Cop)

    xe_spec = pl.BlockSpec((pl.Squeezed(), pl.Squeezed(), TR + 1, Wo + 1, 2 * C),
                           lambda b, r: (b, r, 0, 0, 0))
    xo_spec = pl.BlockSpec((pl.Squeezed(), TR, Wo + 1, 2 * C),
                           lambda b, r: (b, r, 0, 0))
    out_spec = pl.BlockSpec((pl.Squeezed(), TR * Wo, Cop), lambda b, r: (b, r, 0))

    # Preferred: weights/bias staged once, whole-resident in VMEM (single copy,
    # no double buffering).  Fallback: constant-index blocked specs.
    wb_spec_options = (
        [pl.BlockSpec(memory_space=pltpu.MemorySpace.VMEM),
         pl.BlockSpec(memory_space=pltpu.MemorySpace.VMEM)],
        [pl.BlockSpec((9 * C, Cop), lambda b, r: (0, 0)),
         pl.BlockSpec((1, Cop), lambda b, r: (0, 0))],
    )

    out = None
    last_err = None
    for wb_specs in wb_spec_options:
        try:
            out = pl.pallas_call(
                _downsample_conv_kernel,
                out_shape=jax.ShapeDtypeStruct((B, Ho * Wo, Cop), out_dtype),
                grid_spec=pltpu.PrefetchScalarGridSpec(
                    num_scalar_prefetch=0,
                    grid=(B, NT),
                    in_specs=[xe_spec, xo_spec] + wb_specs,
                    out_specs=out_spec,
                    scratch_shapes=[pltpu.VMEM((TR * Wo, 9 * C), cdtype)],
                ),
                compiler_params=pltpu.CompilerParams(
                    dimension_semantics=("parallel", "parallel"),
                    vmem_limit_bytes=vmem_limit),
            )(x_even_t, x_odd, w2, b2)
            break
        except Exception as e:   # fall back to blocked weight specs
            last_err = e
            out = None
    if out is None:
        raise last_err

    # (B, Ho*Wo, Cop) -> NCHW, dropping the lane padding.
    out = out.reshape(B, Ho, Wo, Cop)[..., :C]
    return jnp.transpose(out, (0, 3, 1, 2))


# --------------------------------------------------------------------------
# Self-test
# --------------------------------------------------------------------------
if __name__ == "__main__":
    B, C, H, W = 2, 4, 16, 16

    key = jax.random.PRNGKey(0)
    kx, kw, kb = jax.random.split(key, 3)

    x = jax.random.normal(kx, (B, C, H, W), dtype=jnp.float32)

    # PyTorch Conv2d default init: U(-bound, bound), bound = 1/sqrt(fan_in).
    fan_in = C * 3 * 3
    bound = 1.0 / (fan_in ** 0.5)
    weight = jax.random.uniform(kw, (C, C, 3, 3), jnp.float32, -bound, bound)
    bias = jax.random.uniform(kb, (C,), jnp.float32, -bound, bound)

    # Reference: XLA conv with PyTorch Conv2d semantics.
    ref = lax.conv_general_dilated(
        x, weight, window_strides=(2, 2), padding=((1, 1), (1, 1)),
        dimension_numbers=("NCHW", "OIHW", "NCHW"),
    ) + bias[None, :, None, None]

    # f32 compute path (tight check), auto-chosen row tile.
    out_f32 = jax.block_until_ready(
        downsample_conv(x, weight, bias, compute_dtype=jnp.float32))
    assert out_f32.shape == (B, C, H // 2, W // 2), out_f32.shape
    assert jnp.allclose(out_f32, ref, atol=1e-5, rtol=1e-5)

    # Forced multi-tile grids: exercise the row tiling and the even-row halo.
    for rt in (4, 2):
        out_t = jax.block_until_ready(
            downsample_conv(x, weight, bias, compute_dtype=jnp.float32,
                            row_tile=rt))
        assert jnp.allclose(out_t, ref, atol=1e-5, rtol=1e-5)

    # Default path: bf16 MXU operands, f32 accumulation + bias, cast at store.
    out_bf = jax.block_until_ready(downsample_conv(x, weight, bias))
    assert out_bf.shape == (B, C, H // 2, W // 2)
    assert jnp.allclose(out_bf, ref, atol=1e-1, rtol=1e-1)

    print("KERNEL_OK")
</pallas_src>

<mosaic_0001>
module attributes {stable_mosaic.version = 11 : i64} {
  func.func @_downsample_conv_kernel(%arg0: i32, %arg1: i32, %arg2: memref<1x1x9x9x8xf32, #tpu.memory_space<vmem>>, %arg3: memref<1x8x9x8xf32, #tpu.memory_space<vmem>>, %arg4: memref<36x128xf32, #tpu.memory_space<vmem>>, %arg5: memref<1x128xf32, #tpu.memory_space<vmem>>, %arg6: memref<1x64x128xf32, #tpu.memory_space<vmem>>, %arg7: memref<64x36xf32, #tpu.memory_space<vmem>>) attributes {dimension_semantics = [#tpu.dimension_semantics<parallel>, #tpu.dimension_semantics<parallel>], iteration_bounds = array<i64: 2, 1>, scalar_prefetch = 0 : i64, scratch_operands = 1 : i64, tpu.core_type = #tpu.core_type<tc>, window_params = [{transform_indices = @transform_0, window_bounds = array<i64: 1, 1, 9, 9, 8>}, {transform_indices = @transform_1, window_bounds = array<i64: 1, 8, 9, 8>}, {pipeline_mode = #tpu.pipeline_mode<synchronous>, transform_indices = @transform_2, window_bounds = array<i64: 36, 128>}, {pipeline_mode = #tpu.pipeline_mode<synchronous>, transform_indices = @transform_3, window_bounds = array<i64: 1, 128>}, {transform_indices = @transform_4, window_bounds = array<i64: 1, 64, 128>}]} {
    %c0 = arith.constant 0 : index
    %c0_0 = arith.constant 0 : index
    %c0_1 = arith.constant 0 : index
    %c0_2 = arith.constant 0 : index
    %c0_3 = arith.constant 0 : index
    %0 = vector.load %arg2[%c0, %c0_0, %c0_1, %c0_2, %c0_3] : memref<1x1x9x9x8xf32, #tpu.memory_space<vmem>>, vector<1x1x9x9x8xf32>
    %1 = vector.shape_cast %0 : vector<1x1x9x9x8xf32> to vector<9x9x8xf32>
    %c0_4 = arith.constant 0 : index
    %c0_5 = arith.constant 0 : index
    %c0_6 = arith.constant 0 : index
    %c0_7 = arith.constant 0 : index
    %2 = vector.load %arg3[%c0_4, %c0_5, %c0_6, %c0_7] : memref<1x8x9x8xf32, #tpu.memory_space<vmem>>, vector<1x8x9x8xf32>
    %3 = vector.shape_cast %2 : vector<1x8x9x8xf32> to vector<8x9x8xf32>
    %4 = vector.extract_strided_slice %1 {offsets = [0, 0, 0], sizes = [8, 8, 8], strides = [1, 1, 1]} : vector<9x9x8xf32> to vector<8x8x8xf32>
    %5 = vector.shape_cast %4 : vector<8x8x8xf32> to vector<64x8xf32>
    %c0_8 = arith.constant 0 : index
    %c0_9 = arith.constant 0 : index
    %6 = vector.load %arg7[%c0_8, %c0_9] : memref<64x36xf32, #tpu.memory_space<vmem>>, vector<64x8xf32>
    tpu.vector_store %arg7[%c0_8, %c0_9], %5 {strides = array<i32>} : memref<64x36xf32, #tpu.memory_space<vmem>>, vector<64x8xf32>,
    %7 = vector.extract_strided_slice %1 {offsets = [0, 1, 0], sizes = [8, 8, 4], strides = [1, 1, 1]} : vector<9x9x8xf32> to vector<8x8x4xf32>
    %8 = vector.shape_cast %7 : vector<8x8x4xf32> to vector<64x4xf32>
    %c0_10 = arith.constant 0 : index
    %c8 = arith.constant 8 : index
    %9 = vector.load %arg7[%c0_10, %c8] : memref<64x36xf32, #tpu.memory_space<vmem>>, vector<64x4xf32>
    tpu.vector_store %arg7[%c0_10, %c8], %8 {strides = array<i32>} : memref<64x36xf32, #tpu.memory_space<vmem>>, vector<64x4xf32>,
    %10 = vector.extract_strided_slice %3 {offsets = [0, 0, 0], sizes = [8, 8, 8], strides = [1, 1, 1]} : vector<8x9x8xf32> to vector<8x8x8xf32>
    %11 = vector.shape_cast %10 : vector<8x8x8xf32> to vector<64x8xf32>
    %c0_11 = arith.constant 0 : index
    %c12 = arith.constant 12 : index
    %12 = vector.load %arg7[%c0_11, %c12] : memref<64x36xf32, #tpu.memory_space<vmem>>, vector<64x8xf32>
    tpu.vector_store %arg7[%c0_11, %c12], %11 {strides = array<i32>} : memref<64x36xf32, #tpu.memory_space<vmem>>, vector<64x8xf32>,
    %13 = vector.extract_strided_slice %3 {offsets = [0, 1, 0], sizes = [8, 8, 4], strides = [1, 1, 1]} : vector<8x9x8xf32> to vector<8x8x4xf32>
    %14 = vector.shape_cast %13 : vector<8x8x4xf32> to vector<64x4xf32>
    %c0_12 = arith.constant 0 : index
    %c20 = arith.constant 20 : index
    %15 = vector.load %arg7[%c0_12, %c20] : memref<64x36xf32, #tpu.memory_space<vmem>>, vector<64x4xf32>
    tpu.vector_store %arg7[%c0_12, %c20], %14 {strides = array<i32>} : memref<64x36xf32, #tpu.memory_space<vmem>>, vector<64x4xf32>,
    %16 = vector.extract_strided_slice %1 {offsets = [1, 0, 0], sizes = [8, 8, 8], strides = [1, 1, 1]} : vector<9x9x8xf32> to vector<8x8x8xf32>
    %17 = vector.shape_cast %16 : vector<8x8x8xf32> to vector<64x8xf32>
    %c0_13 = arith.constant 0 : index
    %c24 = arith.constant 24 : index
    %18 = vector.load %arg7[%c0_13, %c24] : memref<64x36xf32, #tpu.memory_space<vmem>>, vector<64x8xf32>
    tpu.vector_store %arg7[%c0_13, %c24], %17 {strides = array<i32>} : memref<64x36xf32, #tpu.memory_space<vmem>>, vector<64x8xf32>,
    %19 = vector.extract_strided_slice %1 {offsets = [1, 1, 0], sizes = [8, 8, 4], strides = [1, 1, 1]} : vector<9x9x8xf32> to vector<8x8x4xf32>
    %20 = vector.shape_cast %19 : vector<8x8x4xf32> to vector<64x4xf32>
    %c0_14 = arith.constant 0 : index
    %c32 = arith.constant 32 : index
    %21 = vector.load %arg7[%c0_14, %c32] : memref<64x36xf32, #tpu.memory_space<vmem>>, vector<64x4xf32>
    tpu.vector_store %arg7[%c0_14, %c32], %20 {strides = array<i32>} : memref<64x36xf32, #tpu.memory_space<vmem>>, vector<64x4xf32>,
    %c0_15 = arith.constant 0 : index
    %c0_16 = arith.constant 0 : index
    %22 = vector.load %arg7[%c0_15, %c0_16] : memref<64x36xf32, #tpu.memory_space<vmem>>, vector<64x36xf32>
    %c0_17 = arith.constant 0 : index
    %c0_18 = arith.constant 0 : index
    %23 = vector.load %arg4[%c0_17, %c0_18] : memref<36x128xf32, #tpu.memory_space<vmem>>, vector<36x128xf32>
    %cst = arith.constant dense<0.000000e+00> : vector<64x128xf32>
    %24 = tpu.matmul %22, %23, %cst {dimension_numbers = #tpu.dot_dimension_numbers<[1], [0], [0], [1], [0, 0, 1, 1], [], []>} : vector<64x36xf32>, vector<36x128xf32>, vector<64x128xf32> -> vector<64x128xf32>
    %c0_19 = arith.constant 0 : index
    %c0_20 = arith.constant 0 : index
    %25 = vector.load %arg5[%c0_19, %c0_20] : memref<1x128xf32, #tpu.memory_space<vmem>>, vector<1x128xf32>
    %26 = vector.broadcast %25 : vector<1x128xf32> to vector<64x128xf32>
    %27 = arith.addf %24, %26 : vector<64x128xf32>
    %c0_21 = arith.constant 0 : index
    %c0_22 = arith.constant 0 : index
    %c0_23 = arith.constant 0 : index
    %28 = vector.load %arg6[%c0_21, %c0_22, %c0_23] : memref<1x64x128xf32, #tpu.memory_space<vmem>>, vector<1x64x128xf32>
    %29 = vector.shape_cast %28 : vector<1x64x128xf32> to vector<64x128xf32>
    %30 = vector.shape_cast %27 : vector<64x128xf32> to vector<1x64x128xf32>
    tpu.vector_store %arg6[%c0_21, %c0_22, %c0_23], %30 {strides = array<i32>} : memref<1x64x128xf32, #tpu.memory_space<vmem>>, vector<1x64x128xf32>,
    return
  }
  func.func @transform_0(%arg0: i32, %arg1: i32) -> (i32, i32, i32, i32, i32) {
    %c0_i32 = arith.constant 0 : i32
    %c0_i32_0 = arith.constant 0 : i32
    %c0_i32_1 = arith.constant 0 : i32
    %c0_i32_2 = arith.constant 0 : i32
    return %arg0, %arg1, %c0_i32, %c0_i32_0, %c0_i32_1 : i32, i32, i32, i32, i32
  }
  func.func @transform_1(%arg0: i32, %arg1: i32) -> (i32, i32, i32, i32) {
    %c0_i32 = arith.constant 0 : i32
    %c0_i32_0 = arith.constant 0 : i32
    %c0_i32_1 = arith.constant 0 : i32
    return %arg0, %arg1, %c0_i32, %c0_i32_0 : i32, i32, i32, i32
  }
  func.func @transform_2(%arg0: i32, %arg1: i32) -> (i32, i32) {
    %c0_i32 = arith.constant 0 : i32
    %c0_i32_0 = arith.constant 0 : i32
    %c0_i32_1 = arith.constant 0 : i32
    return %c0_i32, %c0_i32_0 : i32, i32
  }
  func.func @transform_3(%arg0: i32, %arg1: i32) -> (i32, i32) {
    %c0_i32 = arith.constant 0 : i32
    %c0_i32_0 = arith.constant 0 : i32
    %c0_i32_1 = arith.constant 0 : i32
    return %c0_i32, %c0_i32_0 : i32, i32
  }
  func.func @transform_4(%arg0: i32, %arg1: i32) -> (i32, i32, i32) {
    %c0_i32 = arith.constant 0 : i32
    %c0_i32_0 = arith.constant 0 : i32
    return %arg0, %arg1, %c0_i32 : i32, i32, i32
  }
}

module attributes {stable_mosaic.version = 11 : i64} {
  func.func @_downsample_conv_kernel(%arg0: i32, %arg1: i32, %arg2: memref<1x1x9x9x8xf32, #tpu.memory_space<vmem>>, %arg3: memref<1x8x9x8xf32, #tpu.memory_space<vmem>>, %arg4: memref<36x128xf32, #tpu.memory_space<vmem>>, %arg5: memref<1x128xf32, #tpu.memory_space<vmem>>, %arg6: memref<1x64x128xf32, #tpu.memory_space<vmem>>, %arg7: memref<64x36xf32, #tpu.memory_space<vmem>>) attributes {dimension_semantics = [#tpu.dimension_semantics<parallel>, #tpu.dimension_semantics<parallel>], iteration_bounds = array<i64: 2, 1>, scalar_prefetch = 0 : i64, scratch_operands = 1 : i64, tpu.core_type = #tpu.core_type<tc>, window_params = [{transform_indices = @transform_0, window_bounds = array<i64: 1, 1, 9, 9, 8>}, {transform_indices = @transform_1, window_bounds = array<i64: 1, 8, 9, 8>}, {pipeline_mode = #tpu.pipeline_mode<synchronous>, transform_indices = @transform_2, window_bounds = array<i64: 36, 128>}, {pipeline_mode = #tpu.pipeline_mode<synchronous>, transform_indices = @transform_3, window_bounds = array<i64: 1, 128>}, {transform_indices = @transform_4, window_bounds = array<i64: 1, 64, 128>}]} {
    %c0 = arith.constant 0 : index
    %c0_0 = arith.constant 0 : index
    %c0_1 = arith.constant 0 : index
    %c0_2 = arith.constant 0 : index
    %c0_3 = arith.constant 0 : index
    %0 = vector.load %arg2[%c0, %c0_0, %c0_1, %c0_2, %c0_3] : memref<1x1x9x9x8xf32, #tpu.memory_space<vmem>>, vector<1x1x9x9x8xf32>
    %1 = vector.shape_cast %0 : vector<1x1x9x9x8xf32> to vector<9x9x8xf32>
    %c0_4 = arith.constant 0 : index
    %c0_5 = arith.constant 0 : index
    %c0_6 = arith.constant 0 : index
    %c0_7 = arith.constant 0 : index
    %2 = vector.load %arg3[%c0_4, %c0_5, %c0_6, %c0_7] : memref<1x8x9x8xf32, #tpu.memory_space<vmem>>, vector<1x8x9x8xf32>
    %3 = vector.shape_cast %2 : vector<1x8x9x8xf32> to vector<8x9x8xf32>
    %4 = vector.extract_strided_slice %1 {offsets = [0, 0, 0], sizes = [8, 8, 8], strides = [1, 1, 1]} : vector<9x9x8xf32> to vector<8x8x8xf32>
    %5 = vector.shape_cast %4 : vector<8x8x8xf32> to vector<64x8xf32>
    %c0_8 = arith.constant 0 : index
    %c0_9 = arith.constant 0 : index
    %6 = vector.load %arg7[%c0_8, %c0_9] : memref<64x36xf32, #tpu.memory_space<vmem>>, vector<64x8xf32>
    tpu.vector_store %arg7[%c0_8, %c0_9], %5 {strides = array<i32>} : memref<64x36xf32, #tpu.memory_space<vmem>>, vector<64x8xf32>,
    %7 = vector.extract_strided_slice %1 {offsets = [0, 1, 0], sizes = [8, 8, 4], strides = [1, 1, 1]} : vector<9x9x8xf32> to vector<8x8x4xf32>
    %8 = vector.shape_cast %7 : vector<8x8x4xf32> to vector<64x4xf32>
    %c0_10 = arith.constant 0 : index
    %c8 = arith.constant 8 : index
    %9 = vector.load %arg7[%c0_10, %c8] : memref<64x36xf32, #tpu.memory_space<vmem>>, vector<64x4xf32>
    tpu.vector_store %arg7[%c0_10, %c8], %8 {strides = array<i32>} : memref<64x36xf32, #tpu.memory_space<vmem>>, vector<64x4xf32>,
    %10 = vector.extract_strided_slice %3 {offsets = [0, 0, 0], sizes = [8, 8, 8], strides = [1, 1, 1]} : vector<8x9x8xf32> to vector<8x8x8xf32>
    %11 = vector.shape_cast %10 : vector<8x8x8xf32> to vector<64x8xf32>
    %c0_11 = arith.constant 0 : index
    %c12 = arith.constant 12 : index
    %12 = vector.load %arg7[%c0_11, %c12] : memref<64x36xf32, #tpu.memory_space<vmem>>, vector<64x8xf32>
    tpu.vector_store %arg7[%c0_11, %c12], %11 {strides = array<i32>} : memref<64x36xf32, #tpu.memory_space<vmem>>, vector<64x8xf32>,
    %13 = vector.extract_strided_slice %3 {offsets = [0, 1, 0], sizes = [8, 8, 4], strides = [1, 1, 1]} : vector<8x9x8xf32> to vector<8x8x4xf32>
    %14 = vector.shape_cast %13 : vector<8x8x4xf32> to vector<64x4xf32>
    %c0_12 = arith.constant 0 : index
    %c20 = arith.constant 20 : index
    %15 = vector.load %arg7[%c0_12, %c20] : memref<64x36xf32, #tpu.memory_space<vmem>>, vector<64x4xf32>
    tpu.vector_store %arg7[%c0_12, %c20], %14 {strides = array<i32>} : memref<64x36xf32, #tpu.memory_space<vmem>>, vector<64x4xf32>,
    %16 = vector.extract_strided_slice %1 {offsets = [1, 0, 0], sizes = [8, 8, 8], strides = [1, 1, 1]} : vector<9x9x8xf32> to vector<8x8x8xf32>
    %17 = vector.shape_cast %16 : vector<8x8x8xf32> to vector<64x8xf32>
    %c0_13 = arith.constant 0 : index
    %c24 = arith.constant 24 : index
    %18 = vector.load %arg7[%c0_13, %c24] : memref<64x36xf32, #tpu.memory_space<vmem>>, vector<64x8xf32>
    tpu.vector_store %arg7[%c0_13, %c24], %17 {strides = array<i32>} : memref<64x36xf32, #tpu.memory_space<vmem>>, vector<64x8xf32>,
    %19 = vector.extract_strided_slice %1 {offsets = [1, 1, 0], sizes = [8, 8, 4], strides = [1, 1, 1]} : vector<9x9x8xf32> to vector<8x8x4xf32>
    %20 = vector.shape_cast %19 : vector<8x8x4xf32> to vector<64x4xf32>
    %c0_14 = arith.constant 0 : index
    %c32 = arith.constant 32 : index
    %21 = vector.load %arg7[%c0_14, %c32] : memref<64x36xf32, #tpu.memory_space<vmem>>, vector<64x4xf32>
    tpu.vector_store %arg7[%c0_14, %c32], %20 {strides = array<i32>} : memref<64x36xf32, #tpu.memory_space<vmem>>, vector<64x4xf32>,
    %c0_15 = arith.constant 0 : index
    %c0_16 = arith.constant 0 : index
    %22 = vector.load %arg7[%c0_15, %c0_16] : memref<64x36xf32, #tpu.memory_space<vmem>>, vector<64x36xf32>
    %c0_17 = arith.constant 0 : index
    %c0_18 = arith.constant 0 : index
    %23 = vector.load %arg4[%c0_17, %c0_18] : memref<36x128xf32, #tpu.memory_space<vmem>>, vector<36x128xf32>
    %cst = arith.constant dense<0.000000e+00> : vector<64x128xf32>
    %24 = tpu.matmul %22, %23, %cst {dimension_numbers = #tpu.dot_dimension_numbers<[1], [0], [0], [1], [0, 0, 1, 1], [], []>} : vector<64x36xf32>, vector<36x128xf32>, vector<64x128xf32> -> vector<64x128xf32>
    %c0_19 = arith.constant 0 : index
    %c0_20 = arith.constant 0 : index
    %25 = vector.load %arg5[%c0_19, %c0_20] : memref<1x128xf32, #tpu.memory_space<vmem>>, vector<1x128xf32>
    %26 = vector.broadcast %25 : vector<1x128xf32> to vector<64x128xf32>
    %27 = arith.addf %24, %26 : vector<64x128xf32>
    %c0_21 = arith.constant 0 : index
    %c0_22 = arith.constant 0 : index
    %c0_23 = arith.constant 0 : index
    %28 = vector.load %arg6[%c0_21, %c0_22, %c0_23] : memref<1x64x128xf32, #tpu.memory_space<vmem>>, vector<1x64x128xf32>
    %29 = vector.shape_cast %28 : vector<1x64x128xf32> to vector<64x128xf32>
    %30 = vector.shape_cast %27 : vector<64x128xf32> to vector<1x64x128xf32>
    tpu.vector_store %arg6[%c0_21, %c0_22, %c0_23], %30 {strides = array<i32>} : memref<1x64x128xf32, #tpu.memory_space<vmem>>, vector<1x64x128xf32>,
    return
  }
  func.func @transform_0(%arg0: i32, %arg1: i32) -> (i32, i32, i32, i32, i32) {
    %c0_i32 = arith.constant 0 : i32
    %c0_i32_0 = arith.constant 0 : i32
    %c0_i32_1 = arith.constant 0 : i32
    %c0_i32_2 = arith.constant 0 : i32
    return %arg0, %arg1, %c0_i32, %c0_i32_0, %c0_i32_1 : i32, i32, i32, i32, i32
  }
  func.func @transform_1(%arg0: i32, %arg1: i32) -> (i32, i32, i32, i32) {
    %c0_i32 = arith.constant 0 : i32
    %c0_i32_0 = arith.constant 0 : i32
    %c0_i32_1 = arith.constant 0 : i32
    return %arg0, %arg1, %c0_i32, %c0_i32_0 : i32, i32, i32, i32
  }
  func.func @transform_2(%arg0: i32, %arg1: i32) -> (i32, i32) {
    %c0_i32 = arith.constant 0 : i32
    %c0_i32_0 = arith.constant 0 : i32
    %c0_i32_1 = arith.constant 0 : i32
    return %c0_i32, %c0_i32_0 : i32, i32
  }
  func.func @transform_3(%arg0: i32, %arg1: i32) -> (i32, i32) {
    %c0_i32 = arith.constant 0 : i32
    %c0_i32_0 = arith.constant 0 : i32
    %c0_i32_1 = arith.constant 0 : i32
    return %c0_i32, %c0_i32_0 : i32, i32
  }
  func.func @transform_4(%arg0: i32, %arg1: i32) -> (i32, i32, i32) {
    %c0_i32 = arith.constant 0 : i32
    %c0_i32_0 = arith.constant 0 : i32
    return %arg0, %arg1, %c0_i32 : i32, i32, i32
  }
}

</mosaic_0001>

<llo_original>
// kernel: tpu_custom_call.1
$region0: #{tpu_custom_call.1}
  #allocation0 [shape = 'u32[]', space=smem, size = 0x4, offset = 0x4, fixed_abs, tag = 'smem constant byte address 0x4 - core index']
  #allocation1 [shape = 'u32[144,128]{1,0:T(1,128)}', space=vmem, size = 0x12000, scoped, tag = 'internal scratch']
  #allocation2 [shape = 'f32[64,36]{1,0:T(8,128)}', space=vmem, size = 0x8000, scoped, tag = 'scratch operand']
  %s0 = inlined_call_operand.vmem [shape: f32[2,1,9,9,8], index: 0, kind: input, shape index: {}]
  %s1 = inlined_call_operand.vmem [shape: f32[2,8,9,8], index: 1, kind: input, shape index: {}]
  %s2 = inlined_call_operand.vmem [shape: f32[36,128], index: 2, kind: input, shape index: {}]
  %s3 = inlined_call_operand.vmem [shape: f32[1,128], index: 3, kind: input, shape index: {}]
  %s4 = inlined_call_operand.hbm [shape: f32[2,64,128], index: 4, kind: output, shape index: {}]
  %s5 = sld [smem:[#allocation0]]
  $region49: #{tpu_custom_call.1} parent=0
    _
  %s7 = ssub.s32 1, %s5
  %s8 = scalar_select 0, %s7, %s5
  $region1: #{tpu_custom_call.1} parent=0
    #allocation3 [shape = 'u8[65536]{0}', space=vmem, size = 0x10000, scoped, tag = 'output window, operand 0']
    #allocation4 [shape = 's32[2]{0}', space=sflag, size = 0x8, scoped, tag = 'scoped memory for tpu_custom_call.1']
    %9 = vsyncpa [#allocation4], 0
    %s10 = scalar_lea.sflag [#allocation4], 1
    %11 = vsyncpa %s10, 0
    loop: start=0, step=1, limit=4
    $region2: #{tpu_custom_call.1} parent=1 // loop_pre_header
      _
    $region3: #{tpu_custom_call.1} parent=1 // loop_header
      %s13 = sphi 0, %s17
      %p14 = scmp.ge.s32.totalorder %s13, 4
      %s20 = sphi 0, %s32
      %s21 = sphi 0, %s28
      %s22 = sphi 0, %s20
      %s23 = sphi 0, %s21
      %s24 = sphi 0, %s22
      %s25 = sphi 0, %s23
      %s37 = sphi 0, %s39
      %s40 = sphi 0, %s37
      %s41 = sphi 0, %s40
      %s57 = sphi 0, %s41
      %s65 = sphi 0, %s67
      %s68 = sphi 0, %s65
      %s69 = sphi 0, %s68
      %s85 = sphi 0, %s69
      %s89 = sphi 0, %s89
      %s91 = sphi 0, %s89
      %s92 = sphi 0, %s91
      %s106 = sphi 0, %s92
      %s110 = sphi 0, %s110
      %s112 = sphi 0, %s110
      %s113 = sphi 0, %s112
      %s127 = sphi 0, %s113
      %s135 = sphi 0, %s137
      %s138 = sphi 0, %s135
      %s139 = sphi 0, %s138
      %s155 = sphi 0, %s139
    $region4: #{tpu_custom_call.1} parent=1 // loop_header_branch
      %16 = sbr.rel (%p14) target = $region8
    $region5: #{tpu_custom_call.1} parent=1 // loop_body
      %s18 = ssub.s32 %s13, 1
      %s19 = ssub.s32 %s13, 2
      %s26 = sadd.s32 1, %s21
      %p27 = scmp.ge.s32.totalorder %s26, 1
      %s28 = scalar_select %p27, 0, %s26
      %s29 = sadd.s32 1, %s20
      %s30 = scalar_select %p27, %s29, %s20
      %p31 = scmp.ge.s32.totalorder %s30, 2
      %s32 = scalar_select %p31, 0, %s30
      %s33 = ssub.s32 %s20, %s32
      %s34 = ssub.s32 %s21, %s28
      %s35 = sor.u32 %s33, %s34
      %p36 = scmp.eq.s32.totalorder %s35, 0
      %s38 = sadd.s32 %s37, 1
      %s39 = scalar_select %p36, %s37, %s38
      %p42 = pneg %p36
      %p43 = scmp.eq.s32.totalorder %s13, 1
      %p44 = por %p42, %p43
      %p45 = scmp.ne.s32.totalorder %s37, %s40
      %p46 = scmp.eq.s32.totalorder %s13, 0
      %p47 = por %p45, %p46
      %p48 = scmp.ne.s32.totalorder %s37, %s40
      %p49 = scmp.eq.s32.totalorder %s18, 1
      %p50 = por %p48, %p49
      %p51 = scmp.ne.s32.totalorder %s40, %s41
      %p52 = scmp.eq.s32.totalorder %s18, 0
      %p53 = por %p51, %p52
      %p54 = scmp.ne.s32.totalorder %s40, %s41
      %p55 = scmp.eq.s32.totalorder %s19, 1
      %p56 = por %p54, %p55
      %p58 = scmp.ne.s32.totalorder %s41, %s57
      %p59 = scmp.eq.s32.totalorder %s19, 0
      %p60 = por %p58, %p59
      %s61 = ssub.s32 %s20, %s32
      %s62 = ssub.s32 %s21, %s28
      %s63 = sor.u32 %s61, %s62
      %p64 = scmp.eq.s32.totalorder %s63, 0
      %s66 = sadd.s32 %s65, 1
      %s67 = scalar_select %p64, %s65, %s66
      %p70 = pneg %p64
      %p71 = scmp.eq.s32.totalorder %s13, 1
      %p72 = por %p70, %p71
      %p73 = scmp.ne.s32.totalorder %s65, %s68
      %p74 = scmp.eq.s32.totalorder %s13, 0
      %p75 = por %p73, %p74
      %p76 = scmp.ne.s32.totalorder %s65, %s68
      %p77 = scmp.eq.s32.totalorder %s18, 1
      %p78 = por %p76, %p77
      %p79 = scmp.ne.s32.totalorder %s68, %s69
      %p80 = scmp.eq.s32.totalorder %s18, 0
      %p81 = por %p79, %p80
      %p82 = scmp.ne.s32.totalorder %s68, %s69
      %p83 = scmp.eq.s32.totalorder %s19, 1
      %p84 = por %p82, %p83
      %p86 = scmp.ne.s32.totalorder %s69, %s85
      %p87 = scmp.eq.s32.totalorder %s19, 0
      %p88 = por %p86, %p87
      %s90 = sadd.s32 %s89, 1
      %p93 = scmp.eq.s32.totalorder %s13, 1
      %p94 = scmp.ne.s32.totalorder %s89, %s91
      %p95 = scmp.eq.s32.totalorder %s13, 0
      %p96 = por %p94, %p95
      %p97 = scmp.ne.s32.totalorder %s89, %s91
      %p98 = scmp.eq.s32.totalorder %s18, 1
      %p99 = por %p97, %p98
      %p100 = scmp.ne.s32.totalorder %s91, %s92
      %p101 = scmp.eq.s32.totalorder %s18, 0
      %p102 = por %p100, %p101
      %p103 = scmp.ne.s32.totalorder %s91, %s92
      %p104 = scmp.eq.s32.totalorder %s19, 1
      %p105 = por %p103, %p104
      %p107 = scmp.ne.s32.totalorder %s92, %s106
      %p108 = scmp.eq.s32.totalorder %s19, 0
      %p109 = por %p107, %p108
      %s111 = sadd.s32 %s110, 1
      %p114 = scmp.eq.s32.totalorder %s13, 1
      %p115 = scmp.ne.s32.totalorder %s110, %s112
      %p116 = scmp.eq.s32.totalorder %s13, 0
      %p117 = por %p115, %p116
      %p118 = scmp.ne.s32.totalorder %s110, %s112
      %p119 = scmp.eq.s32.totalorder %s18, 1
      %p120 = por %p118, %p119
      %p121 = scmp.ne.s32.totalorder %s112, %s113
      %p122 = scmp.eq.s32.totalorder %s18, 0
      %p123 = por %p121, %p122
      %p124 = scmp.ne.s32.totalorder %s112, %s113
      %p125 = scmp.eq.s32.totalorder %s19, 1
      %p126 = por %p124, %p125
      %p128 = scmp.ne.s32.totalorder %s113, %s127
      %p129 = scmp.eq.s32.totalorder %s19, 0
      %p130 = por %p128, %p129
      %s131 = ssub.s32 %s20, %s32
      %s132 = ssub.s32 %s21, %s28
      %s133 = sor.u32 %s131, %s132
      %p134 = scmp.eq.s32.totalorder %s133, 0
      %s136 = sadd.s32 %s135, 1
      %s137 = scalar_select %p134, %s135, %s136
      %p140 = pneg %p134
      %p141 = scmp.eq.s32.totalorder %s13, 1
      %p142 = por %p140, %p141
      %p143 = scmp.ne.s32.totalorder %s135, %s138
      %p144 = scmp.eq.s32.totalorder %s13, 0
      %p145 = por %p143, %p144
      %p146 = scmp.ne.s32.totalorder %s135, %s138
      %p147 = scmp.eq.s32.totalorder %s18, 1
      %p148 = por %p146, %p147
      %p149 = scmp.ne.s32.totalorder %s138, %s139
      %p150 = scmp.eq.s32.totalorder %s18, 0
      %p151 = por %p149, %p150
      %p152 = scmp.ne.s32.totalorder %s138, %s139
      %p153 = scmp.eq.s32.totalorder %s19, 1
      %p154 = por %p152, %p153
      %p156 = scmp.ne.s32.totalorder %s139, %s155
      %p157 = scmp.eq.s32.totalorder %s19, 0
      %p158 = por %p156, %p157
      %p159 = scmp.le.s32.totalorder 1, %s13
      %p160 = scmp.lt.s32.totalorder %s13, 3
      %p161 = pnand %p159, %p160
      %p162 = pneg %p161
      // Predicated region
      $region9: #{tpu_custom_call.1} parent=5 // pred_check
        _
      $region10: #{tpu_custom_call.1} parent=5 // pred_check_branch
        %164 = sbr.rel (%p161) target = $region12
      $region11: #{tpu_custom_call.1} parent=5 // pred_region
        %s165 = ssub.s32 %s13, 1
        // Predicated region
        $region13: #{tpu_custom_call.1} parent=11 // pred_check
          %p166 = pneg %p102
        $region14: #{tpu_custom_call.1} parent=11 // pred_check_branch
          %168 = sbr.rel (%p166) target = $region16
        $region15: #{tpu_custom_call.1} parent=11 // pred_region
          _
        $region16: #{tpu_custom_call.1} parent=11 // pred_fallthru
          _
        // Predicated region
        $region17: #{tpu_custom_call.1} parent=11 // pred_check
          %p169 = pneg %p123
        $region18: #{tpu_custom_call.1} parent=11 // pred_check_branch
          %171 = sbr.rel (%p169) target = $region20
        $region19: #{tpu_custom_call.1} parent=11 // pred_region
          _
        $region20: #{tpu_custom_call.1} parent=11 // pred_fallthru
          _
      $region12: #{tpu_custom_call.1} parent=5 // pred_fallthru
        _
      %p172 = scmp.lt.s32.totalorder %s13, 2
      // Predicated region
      $region21: #{tpu_custom_call.1} parent=5 // pred_check
        %p173 = pneg %p172
      $region22: #{tpu_custom_call.1} parent=5 // pred_check_branch
        %175 = sbr.rel (%p173) target = $region24
      $region23: #{tpu_custom_call.1} parent=5 // pred_region
        // Predicated region
        $region25: #{tpu_custom_call.1} parent=23 // pred_check
          %p176 = pneg %p47
        $region26: #{tpu_custom_call.1} parent=23 // pred_check_branch
          %178 = sbr.rel (%p176) target = $region28
        $region27: #{tpu_custom_call.1} parent=23 // pred_region
          %p179 = scmp.lt.s32.totalorder %s20, 1
          %s180 = scalar_select %p179, %s20, 1
          %p181 = scmp.lt.s32.totalorder %s21, 0
          %s182 = scalar_select %p181, %s21, 0
          %s183 = smul.addr %s182, 18
          %s184 = smul.addr %s180, 18
          %s185 = sadd.s32 %s183, %s184
          %s186 = smul.addr %s185, 8
          %s187 = scalar_lea.vmem %s0, %s186
        $region28: #{tpu_custom_call.1} parent=23 // pred_fallthru
          _
        // Predicated region
        $region29: #{tpu_custom_call.1} parent=23 // pred_check
          %p188 = pneg %p75
        $region30: #{tpu_custom_call.1} parent=23 // pred_check_branch
          %190 = sbr.rel (%p188) target = $region32
        $region31: #{tpu_custom_call.1} parent=23 // pred_region
          %s191 = smul.u32 8, %s21
          %p192 = scmp.lt.s32.totalorder %s20, 1
          %s193 = scalar_select %p192, %s20, 1
          %p194 = scmp.lt.s32.totalorder %s191, 7
          %s195 = scalar_select %p194, %s191, 7
          %s196 = smul.addr %s195, 2
          %s197 = smul.addr %s193, 16
          %s198 = sadd.s32 %s196, %s197
          %s199 = smul.addr %s198, 8
          %s200 = scalar_lea.vmem %s1, %s199
          %s201 = smul.u32 8, %s21
        $region32: #{tpu_custom_call.1} parent=23 // pred_fallthru
          _
      $region24: #{tpu_custom_call.1} parent=5 // pred_fallthru
        _
      %p202 = scmp.le.s32.totalorder 1, %s13
      %p203 = scmp.lt.s32.totalorder %s13, 3
      %p204 = pnand %p202, %p203
      %p205 = pneg %p204
      // Predicated region
      $region33: #{tpu_custom_call.1} parent=5 // pred_check
        _
      $region34: #{tpu_custom_call.1} parent=5 // pred_check_branch
        %207 = sbr.rel (%p204) target = $region36
      $region35: #{tpu_custom_call.1} parent=5 // pred_region
        %s208 = ssub.s32 %s13, 1
        %p209 = scmp.lt.s32.totalorder %s22, 1
        %s210 = scalar_select %p209, %s22, 1
        %p211 = scmp.lt.s32.totalorder %s23, 0
        %s212 = scalar_select %p211, %s23, 0
        %s213 = smul.addr %s212, 18
        %s214 = smul.addr %s210, 18
        %s215 = sadd.s32 %s213, %s214
        %s216 = smul.addr %s215, 8
        %s217 = scalar_lea.vmem %s0, %s216
        %p218 = pneg %p53
        %p219 = pneg %p50
        %s220 = smul.u32 8, %s23
        %p221 = scmp.lt.s32.totalorder %s22, 1
        %s222 = scalar_select %p221, %s22, 1
        %p223 = scmp.lt.s32.totalorder %s220, 7
        %s224 = scalar_select %p223, %s220, 7
        %s225 = smul.addr %s224, 2
        %s226 = smul.addr %s222, 16
        %s227 = sadd.s32 %s225, %s226
        %s228 = smul.addr %s227, 8
        %s229 = scalar_lea.vmem %s1, %s228
        %p230 = pneg %p81
        %p231 = pneg %p78
        %p232 = pneg %p102
        %p233 = pneg %p99
        %p234 = pneg %p123
        %p235 = pneg %p120
        %p236 = pneg %p151
        %p237 = pneg %p148
        %s238 = sand.u32 %s138, 1
        %s239 = scalar_lea.sflag [#allocation4], %s238
        %s240 = sand.u32 %s138, 1
        %s241 = smul.addr %s240, 64
        %s242 = scalar_lea.vmem [#allocation3], %s241
        %p243 = scmp.lt.s32.totalorder %s22, 1
        %s244 = scalar_select %p243, %s22, 1
        %p245 = scmp.lt.s32.totalorder %s23, 0
        %s246 = scalar_select %p245, %s23, 0
        %s247 = smul.addr %s246, 18
        %s248 = smul.addr %s244, 18
        %s249 = sadd.s32 %s247, %s248
        %s250 = smul.addr %s249, 8
        %s251 = scalar_lea.vmem %s0, %s250
        %s252 = smul.u32 8, %s23
        %p253 = scmp.lt.s32.totalorder %s22, 1
        %s254 = scalar_select %p253, %s22, 1
        %p255 = scmp.lt.s32.totalorder %s252, 7
        %s256 = scalar_select %p255, %s252, 7
        %s257 = smul.addr %s256, 2
        %s258 = smul.addr %s254, 16
        %s259 = sadd.s32 %s257, %s258
        %s260 = smul.addr %s259, 8
        %s261 = scalar_lea.vmem %s1, %s260
        %s262 = smul.u32 8, %s23
        %s263 = smul.u32 8, %s23
        %v264 = vld [vmem:[%s251] sm:$0xff]
        %v265 = vld [vmem:[%s251 + $0x8] sm:$0x1]
        %v266 = vld [vmem:[%s251 + $0x10] sm:$0xff]
        %v267 = vld [vmem:[%s251 + $0x18] sm:$0x1]
        %v268 = vld [vmem:[%s251 + $0x20] sm:$0xff]
        %v269 = vld [vmem:[%s251 + $0x28] sm:$0x1]
        %v270 = vld [vmem:[%s251 + $0x30] sm:$0xff]
        %v271 = vld [vmem:[%s251 + $0x38] sm:$0x1]
        %v272 = vld [vmem:[%s251 + $0x40] sm:$0xff]
        %v273 = vld [vmem:[%s251 + $0x48] sm:$0x1]
        %v274 = vld [vmem:[%s251 + $0x50] sm:$0xff]
        %v275 = vld [vmem:[%s251 + $0x58] sm:$0x1]
        %v276 = vld [vmem:[%s251 + $0x60] sm:$0xff]
        %v277 = vld [vmem:[%s251 + $0x68] sm:$0x1]
        %v278 = vld [vmem:[%s251 + $0x70] sm:$0xff]
        %v279 = vld [vmem:[%s251 + $0x78] sm:$0x1]
        %v280 = vld [vmem:[%s251 + $0x80] sm:$0xff]
        %v281 = vld [vmem:[%s251 + $0x88] sm:$0x1]
        %v282 = vld [vmem:[%s261] sm:$0xff]
        %v283 = vld [vmem:[%s261 + $0x8] sm:$0x1]
        %v284 = vld [vmem:[%s261 + $0x10] sm:$0xff]
        %v285 = vld [vmem:[%s261 + $0x18] sm:$0x1]
        %v286 = vld [vmem:[%s261 + $0x20] sm:$0xff]
        %v287 = vld [vmem:[%s261 + $0x28] sm:$0x1]
        %v288 = vld [vmem:[%s261 + $0x30] sm:$0xff]
        %v289 = vld [vmem:[%s261 + $0x38] sm:$0x1]
        %v290 = vld [vmem:[%s261 + $0x40] sm:$0xff]
        %v291 = vld [vmem:[%s261 + $0x48] sm:$0x1]
        %v292 = vld [vmem:[%s261 + $0x50] sm:$0xff]
        %v293 = vld [vmem:[%s261 + $0x58] sm:$0x1]
        %v294 = vld [vmem:[%s261 + $0x60] sm:$0xff]
        %v295 = vld [vmem:[%s261 + $0x68] sm:$0x1]
        %v296 = vld [vmem:[%s261 + $0x70] sm:$0xff]
        %v297 = vld [vmem:[%s261 + $0x78] sm:$0x1]
        %vm298 = vcmask 64512
        %299 = vst.msk [vmem:[#allocation2] sm:$0xff] %vm298, %v264
        %300 = vst.msk [vmem:[#allocation2 + $0x8] sm:$0xff] %vm298, %v266
        %301 = vst.msk [vmem:[#allocation2 + $0x10] sm:$0xff] %vm298, %v268
        %302 = vst.msk [vmem:[#allocation2 + $0x18] sm:$0xff] %vm298, %v270
        %303 = vst.msk [vmem:[#allocation2 + $0x20] sm:$0xff] %vm298, %v272
        %304 = vst.msk [vmem:[#allocation2 + $0x28] sm:$0xff] %vm298, %v274
        %305 = vst.msk [vmem:[#allocation2 + $0x30] sm:$0xff] %vm298, %v276
        %306 = vst.msk [vmem:[#allocation2 + $0x38] sm:$0xff] %vm298, %v278
        %vm323 = vcmask 1046528
        %v324 = vrot.slane %v264, 1
        %v325 = vrot.slane %v265, 1
        %v326 = vsel %vm323, %v324, %v325
        %v327 = vrot.slane %v266, 1
        %v328 = vrot.slane %v267, 1
        %v329 = vsel %vm323, %v327, %v328
        %v330 = vrot.slane %v268, 1
        %v331 = vrot.slane %v269, 1
        %v332 = vsel %vm323, %v330, %v331
        %v333 = vrot.slane %v270, 1
        %v334 = vrot.slane %v271, 1
        %v335 = vsel %vm323, %v333, %v334
        %v336 = vrot.slane %v272, 1
        %v337 = vrot.slane %v273, 1
        %v338 = vsel %vm323, %v336, %v337
        %v339 = vrot.slane %v274, 1
        %v340 = vrot.slane %v275, 1
        %v341 = vsel %vm323, %v339, %v340
        %v342 = vrot.slane %v276, 1
        %v343 = vrot.slane %v277, 1
        %v344 = vsel %vm323, %v342, %v343
        %v345 = vrot.slane %v278, 1
        %v346 = vrot.slane %v279, 1
        %v347 = vsel %vm323, %v345, %v346
        %348 = vrot.lane.b32.xlu0 %v326, 8
        %v349 = vpop.permute.xlu0 %348
        %350 = vrot.lane.b32.xlu0 %v329, 8
        %v351 = vpop.permute.xlu0 %350
        %352 = vrot.lane.b32.xlu0 %v332, 8
        %v353 = vpop.permute.xlu0 %352
        %354 = vrot.lane.b32.xlu0 %v335, 8
        %v355 = vpop.permute.xlu0 %354
        %356 = vrot.lane.b32.xlu0 %v338, 8
        %v357 = vpop.permute.xlu0 %356
        %358 = vrot.lane.b32.xlu0 %v341, 8
        %v359 = vpop.permute.xlu0 %358
        %360 = vrot.lane.b32.xlu0 %v344, 8
        %v361 = vpop.permute.xlu0 %360
        %362 = vrot.lane.b32.xlu0 %v347, 8
        %v363 = vpop.permute.xlu0 %362
        %vm372 = vcmask 97344
        %373 = vst.msk [vmem:[#allocation2] sm:$0xff] %vm372, %v349
        %374 = vst.msk [vmem:[#allocation2 + $0x8] sm:$0xff] %vm372, %v351
        %375 = vst.msk [vmem:[#allocation2 + $0x10] sm:$0xff] %vm372, %v353
        %376 = vst.msk [vmem:[#allocation2 + $0x18] sm:$0xff] %vm372, %v355
        %377 = vst.msk [vmem:[#allocation2 + $0x20] sm:$0xff] %vm372, %v357
        %378 = vst.msk [vmem:[#allocation2 + $0x28] sm:$0xff] %vm372, %v359
        %379 = vst.msk [vmem:[#allocation2 + $0x30] sm:$0xff] %vm372, %v361
        %380 = vst.msk [vmem:[#allocation2 + $0x38] sm:$0xff] %vm372, %v363
        %389 = vrot.lane.b32.xlu0 %v282, 12
        %v390 = vpop.permute.xlu0 %389
        %391 = vrot.lane.b32.xlu0 %v284, 12
        %v392 = vpop.permute.xlu0 %391
        %393 = vrot.lane.b32.xlu0 %v286, 12
        %v394 = vpop.permute.xlu0 %393
        %395 = vrot.lane.b32.xlu0 %v288, 12
        %v396 = vpop.permute.xlu0 %395
        %397 = vrot.lane.b32.xlu0 %v290, 12
        %v398 = vpop.permute.xlu0 %397
        %399 = vrot.lane.b32.xlu0 %v292, 12
        %v400 = vpop.permute.xlu0 %399
        %401 = vrot.lane.b32.xlu0 %v294, 12
        %v402 = vpop.permute.xlu0 %401
        %403 = vrot.lane.b32.xlu0 %v296, 12
        %v404 = vpop.permute.xlu0 %403
        %vm413 = vcmask 162912
        %414 = vst.msk [vmem:[#allocation2] sm:$0xff] %vm413, %v390
        %415 = vst.msk [vmem:[#allocation2 + $0x8] sm:$0xff] %vm413, %v392
        %416 = vst.msk [vmem:[#allocation2 + $0x10] sm:$0xff] %vm413, %v394
        %417 = vst.msk [vmem:[#allocation2 + $0x18] sm:$0xff] %vm413, %v396
        %418 = vst.msk [vmem:[#allocation2 + $0x20] sm:$0xff] %vm413, %v398
        %419 = vst.msk [vmem:[#allocation2 + $0x28] sm:$0xff] %vm413, %v400
        %420 = vst.msk [vmem:[#allocation2 + $0x30] sm:$0xff] %vm413, %v402
        %421 = vst.msk [vmem:[#allocation2 + $0x38] sm:$0xff] %vm413, %v404
        %v430 = vrot.slane %v282, 1
        %v431 = vrot.slane %v283, 1
        %v432 = vsel %vm323, %v430, %v431
        %v433 = vrot.slane %v284, 1
        %v434 = vrot.slane %v285, 1
        %v435 = vsel %vm323, %v433, %v434
        %v436 = vrot.slane %v286, 1
        %v437 = vrot.slane %v287, 1
        %v438 = vsel %vm323, %v436, %v437
        %v439 = vrot.slane %v288, 1
        %v440 = vrot.slane %v289, 1
        %v441 = vsel %vm323, %v439, %v440
        %v442 = vrot.slane %v290, 1
        %v443 = vrot.slane %v291, 1
        %v444 = vsel %vm323, %v442, %v443
        %v445 = vrot.slane %v292, 1
        %v446 = vrot.slane %v293, 1
        %v447 = vsel %vm323, %v445, %v446
        %v448 = vrot.slane %v294, 1
        %v449 = vrot.slane %v295, 1
        %v450 = vsel %vm323, %v448, %v449
        %v451 = vrot.slane %v296, 1
        %v452 = vrot.slane %v297, 1
        %v453 = vsel %vm323, %v451, %v452
        %454 = vrot.lane.b32.xlu0 %v432, 20
        %v455 = vpop.permute.xlu0 %454
        %456 = vrot.lane.b32.xlu0 %v435, 20
        %v457 = vpop.permute.xlu0 %456
        %458 = vrot.lane.b32.xlu0 %v438, 20
        %v459 = vpop.permute.xlu0 %458
        %460 = vrot.lane.b32.xlu0 %v441, 20
        %v461 = vpop.permute.xlu0 %460
        %462 = vrot.lane.b32.xlu0 %v444, 20
        %v463 = vpop.permute.xlu0 %462
        %464 = vrot.lane.b32.xlu0 %v447, 20
        %v465 = vpop.permute.xlu0 %464
        %466 = vrot.lane.b32.xlu0 %v450, 20
        %v467 = vpop.permute.xlu0 %466
        %468 = vrot.lane.b32.xlu0 %v453, 20
        %v469 = vpop.permute.xlu0 %468
        %vm478 = vcmask 195744
        %479 = vst.msk [vmem:[#allocation2] sm:$0xff] %vm478, %v455
        %480 = vst.msk [vmem:[#allocation2 + $0x8] sm:$0xff] %vm478, %v457
        %481 = vst.msk [vmem:[#allocation2 + $0x10] sm:$0xff] %vm478, %v459
        %482 = vst.msk [vmem:[#allocation2 + $0x18] sm:$0xff] %vm478, %v461
        %483 = vst.msk [vmem:[#allocation2 + $0x20] sm:$0xff] %vm478, %v463
        %484 = vst.msk [vmem:[#allocation2 + $0x28] sm:$0xff] %vm478, %v465
        %485 = vst.msk [vmem:[#allocation2 + $0x30] sm:$0xff] %vm478, %v467
        %486 = vst.msk [vmem:[#allocation2 + $0x38] sm:$0xff] %vm478, %v469
        %488 = vrot.lane.b32.xlu0 %v266, 24
        %v489 = vpop.permute.xlu0 %488
        %490 = vrot.lane.b32.xlu0 %v268, 24
        %v491 = vpop.permute.xlu0 %490
        %492 = vrot.lane.b32.xlu0 %v270, 24
        %v493 = vpop.permute.xlu0 %492
        %494 = vrot.lane.b32.xlu0 %v272, 24
        %v495 = vpop.permute.xlu0 %494
        %496 = vrot.lane.b32.xlu0 %v274, 24
        %v497 = vpop.permute.xlu0 %496
        %498 = vrot.lane.b32.xlu0 %v276, 24
        %v499 = vpop.permute.xlu0 %498
        %500 = vrot.lane.b32.xlu0 %v278, 24
        %v501 = vpop.permute.xlu0 %500
        %502 = vrot.lane.b32.xlu0 %v280, 24
        %v503 = vpop.permute.xlu0 %502
        %vm512 = vcmask 261312
        %513 = vst.msk [vmem:[#allocation2] sm:$0xff] %vm512, %v489
        %514 = vst.msk [vmem:[#allocation2 + $0x8] sm:$0xff] %vm512, %v491
        %515 = vst.msk [vmem:[#allocation2 + $0x10] sm:$0xff] %vm512, %v493
        %516 = vst.msk [vmem:[#allocation2 + $0x18] sm:$0xff] %vm512, %v495
        %517 = vst.msk [vmem:[#allocation2 + $0x20] sm:$0xff] %vm512, %v497
        %518 = vst.msk [vmem:[#allocation2 + $0x28] sm:$0xff] %vm512, %v499
        %519 = vst.msk [vmem:[#allocation2 + $0x30] sm:$0xff] %vm512, %v501
        %520 = vst.msk [vmem:[#allocation2 + $0x38] sm:$0xff] %vm512, %v503
        %v522 = vrot.slane %v280, 1
        %v523 = vrot.slane %v281, 1
        %v524 = vsel %vm323, %v522, %v523
        %525 = vrot.lane.b32.xlu0 %v329, 32
        %v526 = vpop.permute.xlu0 %525
        %527 = vrot.lane.b32.xlu0 %v332, 32
        %v528 = vpop.permute.xlu0 %527
        %529 = vrot.lane.b32.xlu0 %v335, 32
        %v530 = vpop.permute.xlu0 %529
        %531 = vrot.lane.b32.xlu0 %v338, 32
        %v532 = vpop.permute.xlu0 %531
        %533 = vrot.lane.b32.xlu0 %v341, 32
        %v534 = vpop.permute.xlu0 %533
        %535 = vrot.lane.b32.xlu0 %v344, 32
        %v536 = vpop.permute.xlu0 %535
        %537 = vrot.lane.b32.xlu0 %v347, 32
        %v538 = vpop.permute.xlu0 %537
        %539 = vrot.lane.b32.xlu0 %v524, 32
        %v540 = vpop.permute.xlu0 %539
        %vm549 = vcmask 294144
        %550 = vst.msk [vmem:[#allocation2] sm:$0xff] %vm549, %v526
        %551 = vst.msk [vmem:[#allocation2 + $0x8] sm:$0xff] %vm549, %v528
        %552 = vst.msk [vmem:[#allocation2 + $0x10] sm:$0xff] %vm549, %v530
        %553 = vst.msk [vmem:[#allocation2 + $0x18] sm:$0xff] %vm549, %v532
        %554 = vst.msk [vmem:[#allocation2 + $0x20] sm:$0xff] %vm549, %v534
        %555 = vst.msk [vmem:[#allocation2 + $0x28] sm:$0xff] %vm549, %v536
        %556 = vst.msk [vmem:[#allocation2 + $0x30] sm:$0xff] %vm549, %v538
        %557 = vst.msk [vmem:[#allocation2 + $0x38] sm:$0xff] %vm549, %v540
        %v558 = vld [vmem:[#allocation2] sm:$0xff]
        %v559 = vld [vmem:[#allocation2 + $0x8] sm:$0xff]
        %v560 = vld [vmem:[#allocation2 + $0x10] sm:$0xff]
        %v561 = vld [vmem:[#allocation2 + $0x18] sm:$0xff]
        %v562 = vld [vmem:[#allocation2 + $0x20] sm:$0xff]
        %v563 = vld [vmem:[#allocation2 + $0x28] sm:$0xff]
        %v564 = vld [vmem:[#allocation2 + $0x30] sm:$0xff]
        %v565 = vld [vmem:[#allocation2 + $0x38] sm:$0xff]
        %v566 = vld [vmem:[%s2] sm:$0xff]
        %v567 = vld [vmem:[%s2 + $0x8] sm:$0xff]
        %v568 = vld [vmem:[%s2 + $0x10] sm:$0xff]
        %v569 = vld [vmem:[%s2 + $0x18] sm:$0xff]
        %v570 = vld [vmem:[%s2 + $0x20] sm:$0xf]
        %v571 = vld [vmem:[%s3] sm:$0x1]
        %v573 = vlaneseq
        %v574 = vshrl.u32 %v573, 7
        %v575 = vsub.s32 0, %v574
        %v576 = vrot.slane %v571, %v575
        %vm578 = vcmask 293888
        %v580 = vsel %vm578, %v558, 0
        %v583 = vsel %vm578, %v559, 0
        %v586 = vsel %vm578, %v560, 0
        %v589 = vsel %vm578, %v561, 0
        %v592 = vsel %vm578, %v562, 0
        %v595 = vsel %vm578, %v563, 0
        %v598 = vsel %vm578, %v564, 0
        %v601 = vsel %vm578, %v565, 0
        %vm603 = vcmask 1043456
        %v605 = vsel %vm603, %v570, 0
        %607 = vmatprep.subr.mxu0 0.0
        %608 = vmatpush1.msra.mxu0 0.0
        %609 = vmatprep.subr.mxu0 0.0
        %610 = vmatpush1.msra.mxu0 0.0
        %611 = vmatprep.subr.mxu0 0.0
        %612 = vmatpush1.msra.mxu0 0.0
        %613 = vmatprep.subr.mxu0 0.0
        %614 = vmatpush1.msra.mxu0 0.0
        %615 = vmatprep.subr.mxu0 0.0
        %616 = vmatpush1.msra.mxu0 0.0
        %617 = vmatprep.subr.mxu0 0.0
        %618 = vmatpush1.msra.mxu0 0.0
        %619 = vmatprep.subr.mxu0 0.0
        %620 = vmatpush1.msra.mxu0 0.0
        %621 = vmatprep.subr.mxu0 0.0
        %622 = vmatpush1.msra.mxu0 0.0
        %623 = vmatprep.subr.mxu0 0.0
        %624 = vmatpush1.msra.mxu0 0.0
        %625 = vmatprep.subr.mxu0 0.0
        %626 = vmatpush1.msra.mxu0 0.0
        %627 = vmatprep.subr.mxu0 0.0
        %628 = vmatpush1.msra.mxu0 0.0
        %629 = vmatprep.subr.mxu0 0.0
        %630 = vmatpush1.msra.mxu0 %v605
        %631 = vmatprep.subr.mxu0 0.0
        %632 = vmatpush1.msra.mxu0 %v569
        %633 = vmatprep.subr.mxu0 0.0
        %634 = vmatpush1.msra.mxu0 %v568
        %635 = vmatprep.subr.mxu0 0.0
        %636 = vmatpush1.msra.mxu0 %v567
        %637 = vmatprep.subr.mxu0 0.0
        %638 = vmatpush1.msra.mxu0 %v566
        %639 = vmatprep.subr.mxu0 0.0
        %640 = vmatpush2.msra.mxu0 0.0
        %641 = vmatprep.subr.mxu0 0.0
        %642 = vmatpush2.msra.mxu0 0.0
        %643 = vmatprep.subr.mxu0 0.0
        %644 = vmatpush2.msra.mxu0 0.0
        %645 = vmatprep.subr.mxu0 0.0
        %646 = vmatpush2.msra.mxu0 0.0
        %647 = vmatprep.subr.mxu0 0.0
        %648 = vmatpush2.msra.mxu0 0.0
        %649 = vmatprep.subr.mxu0 0.0
        %650 = vmatpush2.msra.mxu0 0.0
        %651 = vmatprep.subr.mxu0 0.0
        %652 = vmatpush2.msra.mxu0 0.0
        %653 = vmatprep.subr.mxu0 0.0
        %654 = vmatpush2.msra.mxu0 0.0
        %655 = vmatprep.subr.mxu0 0.0
        %656 = vmatpush2.msra.mxu0 0.0
        %657 = vmatprep.subr.mxu0 0.0
        %658 = vmatpush2.msra.mxu0 0.0
        %659 = vmatprep.subr.mxu0 0.0
        %660 = vmatpush2.msra.mxu0 0.0
        %661 = vmatprep.subr.mxu0 0.0
        %662 = vmatpush2.msra.mxu0 0.0
        %663 = vmatprep.subr.mxu0 0.0
        %664 = vmatpush2.msra.mxu0 0.0
        %665 = vmatprep.subr.mxu0 0.0
        %666 = vmatpush2.msra.mxu0 0.0
        %667 = vmatprep.subr.mxu0 0.0
        %668 = vmatpush2.msra.mxu0 0.0
        %669 = vmatprep.subr.mxu0 0.0
        %670 = vmatpush2.msra.mxu0 0.0
        %671 = vmatprep.mubr.f32.mxu0 0.0
        %672 = vmatmul.mubr.f32.gmra.mxu0 %v580
        %v673 = vpop.f32.mrf.mxu0
        %v674 = vadd.f32 %v576, %v673
        %v675 = vpop.f32.mrf.mxu0
        %676 = vmatprep.mubr.f32.mxu0 0.0
        %677 = vmatmul.mubr.f32.gmra.mxu0 %v583
        %v678 = vpop.f32.mrf.mxu0
        %v679 = vadd.f32 %v576, %v678
        %v680 = vpop.f32.mrf.mxu0
        %681 = vmatprep.mubr.f32.mxu0 0.0
        %682 = vmatmul.mubr.f32.gmra.mxu0 %v586
        %v683 = vpop.f32.mrf.mxu0
        %v684 = vadd.f32 %v576, %v683
        %v685 = vpop.f32.mrf.mxu0
        %686 = vmatprep.mubr.f32.mxu0 0.0
        %687 = vmatmul.mubr.f32.gmra.mxu0 %v589
        %v688 = vpop.f32.mrf.mxu0
        %v689 = vadd.f32 %v576, %v688
        %v690 = vpop.f32.mrf.mxu0
        %691 = vmatprep.mubr.f32.mxu0 0.0
        %692 = vmatmul.mubr.f32.gmra.mxu0 %v592
        %v693 = vpop.f32.mrf.mxu0
        %v694 = vadd.f32 %v576, %v693
        %v695 = vpop.f32.mrf.mxu0
        %696 = vmatprep.mubr.f32.mxu0 0.0
        %697 = vmatmul.mubr.f32.gmra.mxu0 %v595
        %v698 = vpop.f32.mrf.mxu0
        %v699 = vadd.f32 %v576, %v698
        %v700 = vpop.f32.mrf.mxu0
        %701 = vmatprep.mubr.f32.mxu0 0.0
        %702 = vmatmul.mubr.f32.gmra.mxu0 %v598
        %v703 = vpop.f32.mrf.mxu0
        %v704 = vadd.f32 %v576, %v703
        %v705 = vpop.f32.mrf.mxu0
        %706 = vmatprep.mubr.f32.mxu0 0.0
        %707 = vmatmul.mubr.f32.gmra.mxu0 %v601
        %v708 = vpop.f32.mrf.mxu0
        %v709 = vadd.f32 %v576, %v708
        %v710 = vpop.f32.mrf.mxu0
        %711 = vdwg.mxu0
        %712 = vst [vmem:[%s242] sm:$0xff] %v674
        %713 = vst [vmem:[%s242 + $0x8] sm:$0xff] %v679
        %714 = vst [vmem:[%s242 + $0x10] sm:$0xff] %v684
        %715 = vst [vmem:[%s242 + $0x18] sm:$0xff] %v689
        %716 = vst [vmem:[%s242 + $0x20] sm:$0xff] %v694
        %717 = vst [vmem:[%s242 + $0x28] sm:$0xff] %v699
        %718 = vst [vmem:[%s242 + $0x30] sm:$0xff] %v704
        %719 = vst [vmem:[%s242 + $0x38] sm:$0xff] %v709
        %s720 = sand.u32 %s138, 1
        %s721 = scalar_lea.sflag [#allocation4], %s720
        %s722 = sand.u32 %s138, 1
        %s723 = smul.addr %s722, 64
        %s724 = scalar_lea.vmem [#allocation3], %s723
        // Predicated region
        $region37: #{tpu_custom_call.1} parent=35 // pred_check
          %p725 = pneg %p148
        $region38: #{tpu_custom_call.1} parent=35 // pred_check_branch
          %727 = sbr.rel (%p725) target = $region40
        $region39: #{tpu_custom_call.1} parent=35 // pred_region
          %s728 = smul.u32 8, %s23
          %s730 = ssub.s32 1024, 1024
          %731 = vsyncadd %s721, %s730
          %s732 = smul.addr %s22, 8
          %s733 = sadd.s32 %s728, %s732
          %s734 = smul.addr %s733, 128
          %s735 = scalar_lea.hbm %s4, %s734
          %s736 = sshll.u32 %s724, 4
          %s737 = int_to_ptr.vmem [resolvable:$true] %s736
          %742 = dma.vmem_to_hbm [thread:$0]  %s737, 1024, %s735, %s721, 128, 128, 8
        $region40: #{tpu_custom_call.1} parent=35 // pred_fallthru
          _
      $region36: #{tpu_custom_call.1} parent=5 // pred_fallthru
        _
      %p743 = scmp.le.s32.totalorder 2, %s13
      // Predicated region
      $region41: #{tpu_custom_call.1} parent=5 // pred_check
        %p744 = pneg %p743
      $region42: #{tpu_custom_call.1} parent=5 // pred_check_branch
        %746 = sbr.rel (%p744) target = $region44
      $region43: #{tpu_custom_call.1} parent=5 // pred_region
        %s747 = ssub.s32 %s13, 2
        // Predicated region
        $region45: #{tpu_custom_call.1} parent=43 // pred_check
          %p748 = pneg %p154
        $region46: #{tpu_custom_call.1} parent=43 // pred_check_branch
          %750 = sbr.rel (%p748) target = $region48
        $region47: #{tpu_custom_call.1} parent=43 // pred_region
          %s751 = sand.u32 %s139, 1
          %s752 = scalar_lea.sflag [#allocation4], %s751
          %s753 = sand.u32 %s139, 1
          %s754 = smul.addr %s753, 64
          %s755 = scalar_lea.vmem [#allocation3], %s754
          %756 = dma.done %s752, 1024
        $region48: #{tpu_custom_call.1} parent=43 // pred_fallthru
          _
      $region44: #{tpu_custom_call.1} parent=5 // pred_fallthru
        _
    $region6: #{tpu_custom_call.1} parent=1 // loop_footer
      %s17 = sadd.s32 1, %s13
    $region7: #{tpu_custom_call.1} parent=1 // loop_footer_branch
      %12 = sbr.rel target = $region3
    $region8: #{tpu_custom_call.1} parent=1 // loop_exit
      _
    %757 = vsyncpa [#allocation4], 1
    %s758 = scalar_lea.sflag [#allocation4], 1
    %759 = vsyncpa %s758, 1

// kernel: tpu_custom_call.1
$region0: #{tpu_custom_call.1}
  #allocation0 [shape = 'u32[]', space=smem, size = 0x4, offset = 0x4, fixed_abs, tag = 'smem constant byte address 0x4 - core index']
  #allocation1 [shape = 'u32[144,128]{1,0:T(1,128)}', space=vmem, size = 0x12000, scoped, tag = 'internal scratch']
  #allocation2 [shape = 'f32[64,36]{1,0:T(8,128)}', space=vmem, size = 0x8000, scoped, tag = 'scratch operand']
  %s0 = inlined_call_operand.vmem [shape: f32[2,1,9,9,8], index: 0, kind: input, shape index: {}]
  %s1 = inlined_call_operand.vmem [shape: f32[2,8,9,8], index: 1, kind: input, shape index: {}]
  %s2 = inlined_call_operand.vmem [shape: f32[36,128], index: 2, kind: input, shape index: {}]
  %s3 = inlined_call_operand.vmem [shape: f32[1,128], index: 3, kind: input, shape index: {}]
  %s4 = inlined_call_operand.hbm [shape: f32[2,64,128], index: 4, kind: output, shape index: {}]
  %s5 = sld [smem:[#allocation0]]
  $region49: #{tpu_custom_call.1} parent=0
    _
  %s7 = ssub.s32 1, %s5
  %s8 = scalar_select 0, %s7, %s5
  $region1: #{tpu_custom_call.1} parent=0
    #allocation3 [shape = 'u8[65536]{0}', space=vmem, size = 0x10000, scoped, tag = 'output window, operand 0']
    #allocation4 [shape = 's32[2]{0}', space=sflag, size = 0x8, scoped, tag = 'scoped memory for tpu_custom_call.1']
    %9 = vsyncpa [#allocation4], 0
    %s10 = scalar_lea.sflag [#allocation4], 1
    %11 = vsyncpa %s10, 0
    loop: start=0, step=1, limit=4
    $region2: #{tpu_custom_call.1} parent=1 // loop_pre_header
      _
    $region3: #{tpu_custom_call.1} parent=1 // loop_header
      %s13 = sphi 0, %s17
      %p14 = scmp.ge.s32.totalorder %s13, 4
      %s20 = sphi 0, %s32
      %s21 = sphi 0, %s28
      %s22 = sphi 0, %s20
      %s23 = sphi 0, %s21
      %s24 = sphi 0, %s22
      %s25 = sphi 0, %s23
      %s37 = sphi 0, %s39
      %s40 = sphi 0, %s37
      %s41 = sphi 0, %s40
      %s57 = sphi 0, %s41
      %s65 = sphi 0, %s67
      %s68 = sphi 0, %s65
      %s69 = sphi 0, %s68
      %s85 = sphi 0, %s69
      %s89 = sphi 0, %s89
      %s91 = sphi 0, %s89
      %s92 = sphi 0, %s91
      %s106 = sphi 0, %s92
      %s110 = sphi 0, %s110
      %s112 = sphi 0, %s110
      %s113 = sphi 0, %s112
      %s127 = sphi 0, %s113
      %s135 = sphi 0, %s137
      %s138 = sphi 0, %s135
      %s139 = sphi 0, %s138
      %s155 = sphi 0, %s139
    $region4: #{tpu_custom_call.1} parent=1 // loop_header_branch
      %16 = sbr.rel (%p14) target = $region8
    $region5: #{tpu_custom_call.1} parent=1 // loop_body
      %s18 = ssub.s32 %s13, 1
      %s19 = ssub.s32 %s13, 2
      %s26 = sadd.s32 1, %s21
      %p27 = scmp.ge.s32.totalorder %s26, 1
      %s28 = scalar_select %p27, 0, %s26
      %s29 = sadd.s32 1, %s20
      %s30 = scalar_select %p27, %s29, %s20
      %p31 = scmp.ge.s32.totalorder %s30, 2
      %s32 = scalar_select %p31, 0, %s30
      %s33 = ssub.s32 %s20, %s32
      %s34 = ssub.s32 %s21, %s28
      %s35 = sor.u32 %s33, %s34
      %p36 = scmp.eq.s32.totalorder %s35, 0
      %s38 = sadd.s32 %s37, 1
      %s39 = scalar_select %p36, %s37, %s38
      %p42 = pneg %p36
      %p43 = scmp.eq.s32.totalorder %s13, 1
      %p44 = por %p42, %p43
      %p45 = scmp.ne.s32.totalorder %s37, %s40
      %p46 = scmp.eq.s32.totalorder %s13, 0
      %p47 = por %p45, %p46
      %p48 = scmp.ne.s32.totalorder %s37, %s40
      %p49 = scmp.eq.s32.totalorder %s18, 1
      %p50 = por %p48, %p49
      %p51 = scmp.ne.s32.totalorder %s40, %s41
      %p52 = scmp.eq.s32.totalorder %s18, 0
      %p53 = por %p51, %p52
      %p54 = scmp.ne.s32.totalorder %s40, %s41
      %p55 = scmp.eq.s32.totalorder %s19, 1
      %p56 = por %p54, %p55
      %p58 = scmp.ne.s32.totalorder %s41, %s57
      %p59 = scmp.eq.s32.totalorder %s19, 0
      %p60 = por %p58, %p59
      %s61 = ssub.s32 %s20, %s32
      %s62 = ssub.s32 %s21, %s28
      %s63 = sor.u32 %s61, %s62
      %p64 = scmp.eq.s32.totalorder %s63, 0
      %s66 = sadd.s32 %s65, 1
      %s67 = scalar_select %p64, %s65, %s66
      %p70 = pneg %p64
      %p71 = scmp.eq.s32.totalorder %s13, 1
      %p72 = por %p70, %p71
      %p73 = scmp.ne.s32.totalorder %s65, %s68
      %p74 = scmp.eq.s32.totalorder %s13, 0
      %p75 = por %p73, %p74
      %p76 = scmp.ne.s32.totalorder %s65, %s68
      %p77 = scmp.eq.s32.totalorder %s18, 1
      %p78 = por %p76, %p77
      %p79 = scmp.ne.s32.totalorder %s68, %s69
      %p80 = scmp.eq.s32.totalorder %s18, 0
      %p81 = por %p79, %p80
      %p82 = scmp.ne.s32.totalorder %s68, %s69
      %p83 = scmp.eq.s32.totalorder %s19, 1
      %p84 = por %p82, %p83
      %p86 = scmp.ne.s32.totalorder %s69, %s85
      %p87 = scmp.eq.s32.totalorder %s19, 0
      %p88 = por %p86, %p87
      %s90 = sadd.s32 %s89, 1
      %p93 = scmp.eq.s32.totalorder %s13, 1
      %p94 = scmp.ne.s32.totalorder %s89, %s91
      %p95 = scmp.eq.s32.totalorder %s13, 0
      %p96 = por %p94, %p95
      %p97 = scmp.ne.s32.totalorder %s89, %s91
      %p98 = scmp.eq.s32.totalorder %s18, 1
      %p99 = por %p97, %p98
      %p100 = scmp.ne.s32.totalorder %s91, %s92
      %p101 = scmp.eq.s32.totalorder %s18, 0
      %p102 = por %p100, %p101
      %p103 = scmp.ne.s32.totalorder %s91, %s92
      %p104 = scmp.eq.s32.totalorder %s19, 1
      %p105 = por %p103, %p104
      %p107 = scmp.ne.s32.totalorder %s92, %s106
      %p108 = scmp.eq.s32.totalorder %s19, 0
      %p109 = por %p107, %p108
      %s111 = sadd.s32 %s110, 1
      %p114 = scmp.eq.s32.totalorder %s13, 1
      %p115 = scmp.ne.s32.totalorder %s110, %s112
      %p116 = scmp.eq.s32.totalorder %s13, 0
      %p117 = por %p115, %p116
      %p118 = scmp.ne.s32.totalorder %s110, %s112
      %p119 = scmp.eq.s32.totalorder %s18, 1
      %p120 = por %p118, %p119
      %p121 = scmp.ne.s32.totalorder %s112, %s113
      %p122 = scmp.eq.s32.totalorder %s18, 0
      %p123 = por %p121, %p122
      %p124 = scmp.ne.s32.totalorder %s112, %s113
      %p125 = scmp.eq.s32.totalorder %s19, 1
      %p126 = por %p124, %p125
      %p128 = scmp.ne.s32.totalorder %s113, %s127
      %p129 = scmp.eq.s32.totalorder %s19, 0
      %p130 = por %p128, %p129
      %s131 = ssub.s32 %s20, %s32
      %s132 = ssub.s32 %s21, %s28
      %s133 = sor.u32 %s131, %s132
      %p134 = scmp.eq.s32.totalorder %s133, 0
      %s136 = sadd.s32 %s135, 1
      %s137 = scalar_select %p134, %s135, %s136
      %p140 = pneg %p134
      %p141 = scmp.eq.s32.totalorder %s13, 1
      %p142 = por %p140, %p141
      %p143 = scmp.ne.s32.totalorder %s135, %s138
      %p144 = scmp.eq.s32.totalorder %s13, 0
      %p145 = por %p143, %p144
      %p146 = scmp.ne.s32.totalorder %s135, %s138
      %p147 = scmp.eq.s32.totalorder %s18, 1
      %p148 = por %p146, %p147
      %p149 = scmp.ne.s32.totalorder %s138, %s139
      %p150 = scmp.eq.s32.totalorder %s18, 0
      %p151 = por %p149, %p150
      %p152 = scmp.ne.s32.totalorder %s138, %s139
      %p153 = scmp.eq.s32.totalorder %s19, 1
      %p154 = por %p152, %p153
      %p156 = scmp.ne.s32.totalorder %s139, %s155
      %p157 = scmp.eq.s32.totalorder %s19, 0
      %p158 = por %p156, %p157
      %p159 = scmp.le.s32.totalorder 1, %s13
      %p160 = scmp.lt.s32.totalorder %s13, 3
      %p161 = pnand %p159, %p160
      %p162 = pneg %p161
      // Predicated region
      $region9: #{tpu_custom_call.1} parent=5 // pred_check
        _
      $region10: #{tpu_custom_call.1} parent=5 // pred_check_branch
        %164 = sbr.rel (%p161) target = $region12
      $region11: #{tpu_custom_call.1} parent=5 // pred_region
        %s165 = ssub.s32 %s13, 1
        // Predicated region
        $region13: #{tpu_custom_call.1} parent=11 // pred_check
          %p166 = pneg %p102
        $region14: #{tpu_custom_call.1} parent=11 // pred_check_branch
          %168 = sbr.rel (%p166) target = $region16
        $region15: #{tpu_custom_call.1} parent=11 // pred_region
          _
        $region16: #{tpu_custom_call.1} parent=11 // pred_fallthru
          _
        // Predicated region
        $region17: #{tpu_custom_call.1} parent=11 // pred_check
          %p169 = pneg %p123
        $region18: #{tpu_custom_call.1} parent=11 // pred_check_branch
          %171 = sbr.rel (%p169) target = $region20
        $region19: #{tpu_custom_call.1} parent=11 // pred_region
          _
        $region20: #{tpu_custom_call.1} parent=11 // pred_fallthru
          _
      $region12: #{tpu_custom_call.1} parent=5 // pred_fallthru
        _
      %p172 = scmp.lt.s32.totalorder %s13, 2
      // Predicated region
      $region21: #{tpu_custom_call.1} parent=5 // pred_check
        %p173 = pneg %p172
      $region22: #{tpu_custom_call.1} parent=5 // pred_check_branch
        %175 = sbr.rel (%p173) target = $region24
      $region23: #{tpu_custom_call.1} parent=5 // pred_region
        // Predicated region
        $region25: #{tpu_custom_call.1} parent=23 // pred_check
          %p176 = pneg %p47
        $region26: #{tpu_custom_call.1} parent=23 // pred_check_branch
          %178 = sbr.rel (%p176) target = $region28
        $region27: #{tpu_custom_call.1} parent=23 // pred_region
          %p179 = scmp.lt.s32.totalorder %s20, 1
          %s180 = scalar_select %p179, %s20, 1
          %p181 = scmp.lt.s32.totalorder %s21, 0
          %s182 = scalar_select %p181, %s21, 0
          %s183 = smul.addr %s182, 18
          %s184 = smul.addr %s180, 18
          %s185 = sadd.s32 %s183, %s184
          %s186 = smul.addr %s185, 8
          %s187 = scalar_lea.vmem %s0, %s186
        $region28: #{tpu_custom_call.1} parent=23 // pred_fallthru
          _
        // Predicated region
        $region29: #{tpu_custom_call.1} parent=23 // pred_check
          %p188 = pneg %p75
        $region30: #{tpu_custom_call.1} parent=23 // pred_check_branch
          %190 = sbr.rel (%p188) target = $region32
        $region31: #{tpu_custom_call.1} parent=23 // pred_region
          %s191 = smul.u32 8, %s21
          %p192 = scmp.lt.s32.totalorder %s20, 1
          %s193 = scalar_select %p192, %s20, 1
          %p194 = scmp.lt.s32.totalorder %s191, 7
          %s195 = scalar_select %p194, %s191, 7
          %s196 = smul.addr %s195, 2
          %s197 = smul.addr %s193, 16
          %s198 = sadd.s32 %s196, %s197
          %s199 = smul.addr %s198, 8
          %s200 = scalar_lea.vmem %s1, %s199
          %s201 = smul.u32 8, %s21
        $region32: #{tpu_custom_call.1} parent=23 // pred_fallthru
          _
      $region24: #{tpu_custom_call.1} parent=5 // pred_fallthru
        _
      %p202 = scmp.le.s32.totalorder 1, %s13
      %p203 = scmp.lt.s32.totalorder %s13, 3
      %p204 = pnand %p202, %p203
      %p205 = pneg %p204
      // Predicated region
      $region33: #{tpu_custom_call.1} parent=5 // pred_check
        _
      $region34: #{tpu_custom_call.1} parent=5 // pred_check_branch
        %207 = sbr.rel (%p204) target = $region36
      $region35: #{tpu_custom_call.1} parent=5 // pred_region
        %s208 = ssub.s32 %s13, 1
        %p209 = scmp.lt.s32.totalorder %s22, 1
        %s210 = scalar_select %p209, %s22, 1
        %p211 = scmp.lt.s32.totalorder %s23, 0
        %s212 = scalar_select %p211, %s23, 0
        %s213 = smul.addr %s212, 18
        %s214 = smul.addr %s210, 18
        %s215 = sadd.s32 %s213, %s214
        %s216 = smul.addr %s215, 8
        %s217 = scalar_lea.vmem %s0, %s216
        %p218 = pneg %p53
        %p219 = pneg %p50
        %s220 = smul.u32 8, %s23
        %p221 = scmp.lt.s32.totalorder %s22, 1
        %s222 = scalar_select %p221, %s22, 1
        %p223 = scmp.lt.s32.totalorder %s220, 7
        %s224 = scalar_select %p223, %s220, 7
        %s225 = smul.addr %s224, 2
        %s226 = smul.addr %s222, 16
        %s227 = sadd.s32 %s225, %s226
        %s228 = smul.addr %s227, 8
        %s229 = scalar_lea.vmem %s1, %s228
        %p230 = pneg %p81
        %p231 = pneg %p78
        %p232 = pneg %p102
        %p233 = pneg %p99
        %p234 = pneg %p123
        %p235 = pneg %p120
        %p236 = pneg %p151
        %p237 = pneg %p148
        %s238 = sand.u32 %s138, 1
        %s239 = scalar_lea.sflag [#allocation4], %s238
        %s240 = sand.u32 %s138, 1
        %s241 = smul.addr %s240, 64
        %s242 = scalar_lea.vmem [#allocation3], %s241
        %p243 = scmp.lt.s32.totalorder %s22, 1
        %s244 = scalar_select %p243, %s22, 1
        %p245 = scmp.lt.s32.totalorder %s23, 0
        %s246 = scalar_select %p245, %s23, 0
        %s247 = smul.addr %s246, 18
        %s248 = smul.addr %s244, 18
        %s249 = sadd.s32 %s247, %s248
        %s250 = smul.addr %s249, 8
        %s251 = scalar_lea.vmem %s0, %s250
        %s252 = smul.u32 8, %s23
        %p253 = scmp.lt.s32.totalorder %s22, 1
        %s254 = scalar_select %p253, %s22, 1
        %p255 = scmp.lt.s32.totalorder %s252, 7
        %s256 = scalar_select %p255, %s252, 7
        %s257 = smul.addr %s256, 2
        %s258 = smul.addr %s254, 16
        %s259 = sadd.s32 %s257, %s258
        %s260 = smul.addr %s259, 8
        %s261 = scalar_lea.vmem %s1, %s260
        %s262 = smul.u32 8, %s23
        %s263 = smul.u32 8, %s23
        %v264 = vld [vmem:[%s251] sm:$0xff]
        %v265 = vld [vmem:[%s251 + $0x8] sm:$0x1]
        %v266 = vld [vmem:[%s251 + $0x10] sm:$0xff]
        %v267 = vld [vmem:[%s251 + $0x18] sm:$0x1]
        %v268 = vld [vmem:[%s251 + $0x20] sm:$0xff]
        %v269 = vld [vmem:[%s251 + $0x28] sm:$0x1]
        %v270 = vld [vmem:[%s251 + $0x30] sm:$0xff]
        %v271 = vld [vmem:[%s251 + $0x38] sm:$0x1]
        %v272 = vld [vmem:[%s251 + $0x40] sm:$0xff]
        %v273 = vld [vmem:[%s251 + $0x48] sm:$0x1]
        %v274 = vld [vmem:[%s251 + $0x50] sm:$0xff]
        %v275 = vld [vmem:[%s251 + $0x58] sm:$0x1]
        %v276 = vld [vmem:[%s251 + $0x60] sm:$0xff]
        %v277 = vld [vmem:[%s251 + $0x68] sm:$0x1]
        %v278 = vld [vmem:[%s251 + $0x70] sm:$0xff]
        %v279 = vld [vmem:[%s251 + $0x78] sm:$0x1]
        %v280 = vld [vmem:[%s251 + $0x80] sm:$0xff]
        %v281 = vld [vmem:[%s251 + $0x88] sm:$0x1]
        %v282 = vld [vmem:[%s261] sm:$0xff]
        %v283 = vld [vmem:[%s261 + $0x8] sm:$0x1]
        %v284 = vld [vmem:[%s261 + $0x10] sm:$0xff]
        %v285 = vld [vmem:[%s261 + $0x18] sm:$0x1]
        %v286 = vld [vmem:[%s261 + $0x20] sm:$0xff]
        %v287 = vld [vmem:[%s261 + $0x28] sm:$0x1]
        %v288 = vld [vmem:[%s261 + $0x30] sm:$0xff]
        %v289 = vld [vmem:[%s261 + $0x38] sm:$0x1]
        %v290 = vld [vmem:[%s261 + $0x40] sm:$0xff]
        %v291 = vld [vmem:[%s261 + $0x48] sm:$0x1]
        %v292 = vld [vmem:[%s261 + $0x50] sm:$0xff]
        %v293 = vld [vmem:[%s261 + $0x58] sm:$0x1]
        %v294 = vld [vmem:[%s261 + $0x60] sm:$0xff]
        %v295 = vld [vmem:[%s261 + $0x68] sm:$0x1]
        %v296 = vld [vmem:[%s261 + $0x70] sm:$0xff]
        %v297 = vld [vmem:[%s261 + $0x78] sm:$0x1]
        %vm298 = vcmask 64512
        %299 = vst.msk [vmem:[#allocation2] sm:$0xff] %vm298, %v264
        %300 = vst.msk [vmem:[#allocation2 + $0x8] sm:$0xff] %vm298, %v266
        %301 = vst.msk [vmem:[#allocation2 + $0x10] sm:$0xff] %vm298, %v268
        %302 = vst.msk [vmem:[#allocation2 + $0x18] sm:$0xff] %vm298, %v270
        %303 = vst.msk [vmem:[#allocation2 + $0x20] sm:$0xff] %vm298, %v272
        %304 = vst.msk [vmem:[#allocation2 + $0x28] sm:$0xff] %vm298, %v274
        %305 = vst.msk [vmem:[#allocation2 + $0x30] sm:$0xff] %vm298, %v276
        %306 = vst.msk [vmem:[#allocation2 + $0x38] sm:$0xff] %vm298, %v278
        %vm323 = vcmask 1046528
        %v324 = vrot.slane %v264, 1
        %v325 = vrot.slane %v265, 1
        %v326 = vsel %vm323, %v324, %v325
        %v327 = vrot.slane %v266, 1
        %v328 = vrot.slane %v267, 1
        %v329 = vsel %vm323, %v327, %v328
        %v330 = vrot.slane %v268, 1
        %v331 = vrot.slane %v269, 1
        %v332 = vsel %vm323, %v330, %v331
        %v333 = vrot.slane %v270, 1
        %v334 = vrot.slane %v271, 1
        %v335 = vsel %vm323, %v333, %v334
        %v336 = vrot.slane %v272, 1
        %v337 = vrot.slane %v273, 1
        %v338 = vsel %vm323, %v336, %v337
        %v339 = vrot.slane %v274, 1
        %v340 = vrot.slane %v275, 1
        %v341 = vsel %vm323, %v339, %v340
        %v342 = vrot.slane %v276, 1
        %v343 = vrot.slane %v277, 1
        %v344 = vsel %vm323, %v342, %v343
        %v345 = vrot.slane %v278, 1
        %v346 = vrot.slane %v279, 1
        %v347 = vsel %vm323, %v345, %v346
        %348 = vrot.lane.b32.xlu0 %v326, 8
        %v349 = vpop.permute.xlu0 %348
        %350 = vrot.lane.b32.xlu0 %v329, 8
        %v351 = vpop.permute.xlu0 %350
        %352 = vrot.lane.b32.xlu0 %v332, 8
        %v353 = vpop.permute.xlu0 %352
        %354 = vrot.lane.b32.xlu0 %v335, 8
        %v355 = vpop.permute.xlu0 %354
        %356 = vrot.lane.b32.xlu0 %v338, 8
        %v357 = vpop.permute.xlu0 %356
        %358 = vrot.lane.b32.xlu0 %v341, 8
        %v359 = vpop.permute.xlu0 %358
        %360 = vrot.lane.b32.xlu0 %v344, 8
        %v361 = vpop.permute.xlu0 %360
        %362 = vrot.lane.b32.xlu0 %v347, 8
        %v363 = vpop.permute.xlu0 %362
        %vm372 = vcmask 97344
        %373 = vst.msk [vmem:[#allocation2] sm:$0xff] %vm372, %v349
        %374 = vst.msk [vmem:[#allocation2 + $0x8] sm:$0xff] %vm372, %v351
        %375 = vst.msk [vmem:[#allocation2 + $0x10] sm:$0xff] %vm372, %v353
        %376 = vst.msk [vmem:[#allocation2 + $0x18] sm:$0xff] %vm372, %v355
        %377 = vst.msk [vmem:[#allocation2 + $0x20] sm:$0xff] %vm372, %v357
        %378 = vst.msk [vmem:[#allocation2 + $0x28] sm:$0xff] %vm372, %v359
        %379 = vst.msk [vmem:[#allocation2 + $0x30] sm:$0xff] %vm372, %v361
        %380 = vst.msk [vmem:[#allocation2 + $0x38] sm:$0xff] %vm372, %v363
        %389 = vrot.lane.b32.xlu0 %v282, 12
        %v390 = vpop.permute.xlu0 %389
        %391 = vrot.lane.b32.xlu0 %v284, 12
        %v392 = vpop.permute.xlu0 %391
        %393 = vrot.lane.b32.xlu0 %v286, 12
        %v394 = vpop.permute.xlu0 %393
        %395 = vrot.lane.b32.xlu0 %v288, 12
        %v396 = vpop.permute.xlu0 %395
        %397 = vrot.lane.b32.xlu0 %v290, 12
        %v398 = vpop.permute.xlu0 %397
        %399 = vrot.lane.b32.xlu0 %v292, 12
        %v400 = vpop.permute.xlu0 %399
        %401 = vrot.lane.b32.xlu0 %v294, 12
        %v402 = vpop.permute.xlu0 %401
        %403 = vrot.lane.b32.xlu0 %v296, 12
        %v404 = vpop.permute.xlu0 %403
        %vm413 = vcmask 162912
        %414 = vst.msk [vmem:[#allocation2] sm:$0xff] %vm413, %v390
        %415 = vst.msk [vmem:[#allocation2 + $0x8] sm:$0xff] %vm413, %v392
        %416 = vst.msk [vmem:[#allocation2 + $0x10] sm:$0xff] %vm413, %v394
        %417 = vst.msk [vmem:[#allocation2 + $0x18] sm:$0xff] %vm413, %v396
        %418 = vst.msk [vmem:[#allocation2 + $0x20] sm:$0xff] %vm413, %v398
        %419 = vst.msk [vmem:[#allocation2 + $0x28] sm:$0xff] %vm413, %v400
        %420 = vst.msk [vmem:[#allocation2 + $0x30] sm:$0xff] %vm413, %v402
        %421 = vst.msk [vmem:[#allocation2 + $0x38] sm:$0xff] %vm413, %v404
        %v430 = vrot.slane %v282, 1
        %v431 = vrot.slane %v283, 1
        %v432 = vsel %vm323, %v430, %v431
        %v433 = vrot.slane %v284, 1
        %v434 = vrot.slane %v285, 1
        %v435 = vsel %vm323, %v433, %v434
        %v436 = vrot.slane %v286, 1
        %v437 = vrot.slane %v287, 1
        %v438 = vsel %vm323, %v436, %v437
        %v439 = vrot.slane %v288, 1
        %v440 = vrot.slane %v289, 1
        %v441 = vsel %vm323, %v439, %v440
        %v442 = vrot.slane %v290, 1
        %v443 = vrot.slane %v291, 1
        %v444 = vsel %vm323, %v442, %v443
        %v445 = vrot.slane %v292, 1
        %v446 = vrot.slane %v293, 1
        %v447 = vsel %vm323, %v445, %v446
        %v448 = vrot.slane %v294, 1
        %v449 = vrot.slane %v295, 1
        %v450 = vsel %vm323, %v448, %v449
        %v451 = vrot.slane %v296, 1
        %v452 = vrot.slane %v297, 1
        %v453 = vsel %vm323, %v451, %v452
        %454 = vrot.lane.b32.xlu0 %v432, 20
        %v455 = vpop.permute.xlu0 %454
        %456 = vrot.lane.b32.xlu0 %v435, 20
        %v457 = vpop.permute.xlu0 %456
        %458 = vrot.lane.b32.xlu0 %v438, 20
        %v459 = vpop.permute.xlu0 %458
        %460 = vrot.lane.b32.xlu0 %v441, 20
        %v461 = vpop.permute.xlu0 %460
        %462 = vrot.lane.b32.xlu0 %v444, 20
        %v463 = vpop.permute.xlu0 %462
        %464 = vrot.lane.b32.xlu0 %v447, 20
        %v465 = vpop.permute.xlu0 %464
        %466 = vrot.lane.b32.xlu0 %v450, 20
        %v467 = vpop.permute.xlu0 %466
        %468 = vrot.lane.b32.xlu0 %v453, 20
        %v469 = vpop.permute.xlu0 %468
        %vm478 = vcmask 195744
        %479 = vst.msk [vmem:[#allocation2] sm:$0xff] %vm478, %v455
        %480 = vst.msk [vmem:[#allocation2 + $0x8] sm:$0xff] %vm478, %v457
        %481 = vst.msk [vmem:[#allocation2 + $0x10] sm:$0xff] %vm478, %v459
        %482 = vst.msk [vmem:[#allocation2 + $0x18] sm:$0xff] %vm478, %v461
        %483 = vst.msk [vmem:[#allocation2 + $0x20] sm:$0xff] %vm478, %v463
        %484 = vst.msk [vmem:[#allocation2 + $0x28] sm:$0xff] %vm478, %v465
        %485 = vst.msk [vmem:[#allocation2 + $0x30] sm:$0xff] %vm478, %v467
        %486 = vst.msk [vmem:[#allocation2 + $0x38] sm:$0xff] %vm478, %v469
        %488 = vrot.lane.b32.xlu0 %v266, 24
        %v489 = vpop.permute.xlu0 %488
        %490 = vrot.lane.b32.xlu0 %v268, 24
        %v491 = vpop.permute.xlu0 %490
        %492 = vrot.lane.b32.xlu0 %v270, 24
        %v493 = vpop.permute.xlu0 %492
        %494 = vrot.lane.b32.xlu0 %v272, 24
        %v495 = vpop.permute.xlu0 %494
        %496 = vrot.lane.b32.xlu0 %v274, 24
        %v497 = vpop.permute.xlu0 %496
        %498 = vrot.lane.b32.xlu0 %v276, 24
        %v499 = vpop.permute.xlu0 %498
        %500 = vrot.lane.b32.xlu0 %v278, 24
        %v501 = vpop.permute.xlu0 %500
        %502 = vrot.lane.b32.xlu0 %v280, 24
        %v503 = vpop.permute.xlu0 %502
        %vm512 = vcmask 261312
        %513 = vst.msk [vmem:[#allocation2] sm:$0xff] %vm512, %v489
        %514 = vst.msk [vmem:[#allocation2 + $0x8] sm:$0xff] %vm512, %v491
        %515 = vst.msk [vmem:[#allocation2 + $0x10] sm:$0xff] %vm512, %v493
        %516 = vst.msk [vmem:[#allocation2 + $0x18] sm:$0xff] %vm512, %v495
        %517 = vst.msk [vmem:[#allocation2 + $0x20] sm:$0xff] %vm512, %v497
        %518 = vst.msk [vmem:[#allocation2 + $0x28] sm:$0xff] %vm512, %v499
        %519 = vst.msk [vmem:[#allocation2 + $0x30] sm:$0xff] %vm512, %v501
        %520 = vst.msk [vmem:[#allocation2 + $0x38] sm:$0xff] %vm512, %v503
        %v522 = vrot.slane %v280, 1
        %v523 = vrot.slane %v281, 1
        %v524 = vsel %vm323, %v522, %v523
        %525 = vrot.lane.b32.xlu0 %v329, 32
        %v526 = vpop.permute.xlu0 %525
        %527 = vrot.lane.b32.xlu0 %v332, 32
        %v528 = vpop.permute.xlu0 %527
        %529 = vrot.lane.b32.xlu0 %v335, 32
        %v530 = vpop.permute.xlu0 %529
        %531 = vrot.lane.b32.xlu0 %v338, 32
        %v532 = vpop.permute.xlu0 %531
        %533 = vrot.lane.b32.xlu0 %v341, 32
        %v534 = vpop.permute.xlu0 %533
        %535 = vrot.lane.b32.xlu0 %v344, 32
        %v536 = vpop.permute.xlu0 %535
        %537 = vrot.lane.b32.xlu0 %v347, 32
        %v538 = vpop.permute.xlu0 %537
        %539 = vrot.lane.b32.xlu0 %v524, 32
        %v540 = vpop.permute.xlu0 %539
        %vm549 = vcmask 294144
        %550 = vst.msk [vmem:[#allocation2] sm:$0xff] %vm549, %v526
        %551 = vst.msk [vmem:[#allocation2 + $0x8] sm:$0xff] %vm549, %v528
        %552 = vst.msk [vmem:[#allocation2 + $0x10] sm:$0xff] %vm549, %v530
        %553 = vst.msk [vmem:[#allocation2 + $0x18] sm:$0xff] %vm549, %v532
        %554 = vst.msk [vmem:[#allocation2 + $0x20] sm:$0xff] %vm549, %v534
        %555 = vst.msk [vmem:[#allocation2 + $0x28] sm:$0xff] %vm549, %v536
        %556 = vst.msk [vmem:[#allocation2 + $0x30] sm:$0xff] %vm549, %v538
        %557 = vst.msk [vmem:[#allocation2 + $0x38] sm:$0xff] %vm549, %v540
        %v558 = vld [vmem:[#allocation2] sm:$0xff]
        %v559 = vld [vmem:[#allocation2 + $0x8] sm:$0xff]
        %v560 = vld [vmem:[#allocation2 + $0x10] sm:$0xff]
        %v561 = vld [vmem:[#allocation2 + $0x18] sm:$0xff]
        %v562 = vld [vmem:[#allocation2 + $0x20] sm:$0xff]
        %v563 = vld [vmem:[#allocation2 + $0x28] sm:$0xff]
        %v564 = vld [vmem:[#allocation2 + $0x30] sm:$0xff]
        %v565 = vld [vmem:[#allocation2 + $0x38] sm:$0xff]
        %v566 = vld [vmem:[%s2] sm:$0xff]
        %v567 = vld [vmem:[%s2 + $0x8] sm:$0xff]
        %v568 = vld [vmem:[%s2 + $0x10] sm:$0xff]
        %v569 = vld [vmem:[%s2 + $0x18] sm:$0xff]
        %v570 = vld [vmem:[%s2 + $0x20] sm:$0xf]
        %v571 = vld [vmem:[%s3] sm:$0x1]
        %v573 = vlaneseq
        %v574 = vshrl.u32 %v573, 7
        %v575 = vsub.s32 0, %v574
        %v576 = vrot.slane %v571, %v575
        %vm578 = vcmask 293888
        %v580 = vsel %vm578, %v558, 0
        %v583 = vsel %vm578, %v559, 0
        %v586 = vsel %vm578, %v560, 0
        %v589 = vsel %vm578, %v561, 0
        %v592 = vsel %vm578, %v562, 0
        %v595 = vsel %vm578, %v563, 0
        %v598 = vsel %vm578, %v564, 0
        %v601 = vsel %vm578, %v565, 0
        %vm603 = vcmask 1043456
        %v605 = vsel %vm603, %v570, 0
        %607 = vmatprep.subr.mxu0 0.0
        %608 = vmatpush1.msra.mxu0 0.0
        %609 = vmatprep.subr.mxu0 0.0
        %610 = vmatpush1.msra.mxu0 0.0
        %611 = vmatprep.subr.mxu0 0.0
        %612 = vmatpush1.msra.mxu0 0.0
        %613 = vmatprep.subr.mxu0 0.0
        %614 = vmatpush1.msra.mxu0 0.0
        %615 = vmatprep.subr.mxu0 0.0
        %616 = vmatpush1.msra.mxu0 0.0
        %617 = vmatprep.subr.mxu0 0.0
        %618 = vmatpush1.msra.mxu0 0.0
        %619 = vmatprep.subr.mxu0 0.0
        %620 = vmatpush1.msra.mxu0 0.0
        %621 = vmatprep.subr.mxu0 0.0
        %622 = vmatpush1.msra.mxu0 0.0
        %623 = vmatprep.subr.mxu0 0.0
        %624 = vmatpush1.msra.mxu0 0.0
        %625 = vmatprep.subr.mxu0 0.0
        %626 = vmatpush1.msra.mxu0 0.0
        %627 = vmatprep.subr.mxu0 0.0
        %628 = vmatpush1.msra.mxu0 0.0
        %629 = vmatprep.subr.mxu0 0.0
        %630 = vmatpush1.msra.mxu0 %v605
        %631 = vmatprep.subr.mxu0 0.0
        %632 = vmatpush1.msra.mxu0 %v569
        %633 = vmatprep.subr.mxu0 0.0
        %634 = vmatpush1.msra.mxu0 %v568
        %635 = vmatprep.subr.mxu0 0.0
        %636 = vmatpush1.msra.mxu0 %v567
        %637 = vmatprep.subr.mxu0 0.0
        %638 = vmatpush1.msra.mxu0 %v566
        %639 = vmatprep.subr.mxu0 0.0
        %640 = vmatpush2.msra.mxu0 0.0
        %641 = vmatprep.subr.mxu0 0.0
        %642 = vmatpush2.msra.mxu0 0.0
        %643 = vmatprep.subr.mxu0 0.0
        %644 = vmatpush2.msra.mxu0 0.0
        %645 = vmatprep.subr.mxu0 0.0
        %646 = vmatpush2.msra.mxu0 0.0
        %647 = vmatprep.subr.mxu0 0.0
        %648 = vmatpush2.msra.mxu0 0.0
        %649 = vmatprep.subr.mxu0 0.0
        %650 = vmatpush2.msra.mxu0 0.0
        %651 = vmatprep.subr.mxu0 0.0
        %652 = vmatpush2.msra.mxu0 0.0
        %653 = vmatprep.subr.mxu0 0.0
        %654 = vmatpush2.msra.mxu0 0.0
        %655 = vmatprep.subr.mxu0 0.0
        %656 = vmatpush2.msra.mxu0 0.0
        %657 = vmatprep.subr.mxu0 0.0
        %658 = vmatpush2.msra.mxu0 0.0
        %659 = vmatprep.subr.mxu0 0.0
        %660 = vmatpush2.msra.mxu0 0.0
        %661 = vmatprep.subr.mxu0 0.0
        %662 = vmatpush2.msra.mxu0 0.0
        %663 = vmatprep.subr.mxu0 0.0
        %664 = vmatpush2.msra.mxu0 0.0
        %665 = vmatprep.subr.mxu0 0.0
        %666 = vmatpush2.msra.mxu0 0.0
        %667 = vmatprep.subr.mxu0 0.0
        %668 = vmatpush2.msra.mxu0 0.0
        %669 = vmatprep.subr.mxu0 0.0
        %670 = vmatpush2.msra.mxu0 0.0
        %671 = vmatprep.mubr.f32.mxu0 0.0
        %672 = vmatmul.mubr.f32.gmra.mxu0 %v580
        %v673 = vpop.f32.mrf.mxu0
        %v674 = vadd.f32 %v576, %v673
        %v675 = vpop.f32.mrf.mxu0
        %676 = vmatprep.mubr.f32.mxu0 0.0
        %677 = vmatmul.mubr.f32.gmra.mxu0 %v583
        %v678 = vpop.f32.mrf.mxu0
        %v679 = vadd.f32 %v576, %v678
        %v680 = vpop.f32.mrf.mxu0
        %681 = vmatprep.mubr.f32.mxu0 0.0
        %682 = vmatmul.mubr.f32.gmra.mxu0 %v586
        %v683 = vpop.f32.mrf.mxu0
        %v684 = vadd.f32 %v576, %v683
        %v685 = vpop.f32.mrf.mxu0
        %686 = vmatprep.mubr.f32.mxu0 0.0
        %687 = vmatmul.mubr.f32.gmra.mxu0 %v589
        %v688 = vpop.f32.mrf.mxu0
        %v689 = vadd.f32 %v576, %v688
        %v690 = vpop.f32.mrf.mxu0
        %691 = vmatprep.mubr.f32.mxu0 0.0
        %692 = vmatmul.mubr.f32.gmra.mxu0 %v592
        %v693 = vpop.f32.mrf.mxu0
        %v694 = vadd.f32 %v576, %v693
        %v695 = vpop.f32.mrf.mxu0
        %696 = vmatprep.mubr.f32.mxu0 0.0
        %697 = vmatmul.mubr.f32.gmra.mxu0 %v595
        %v698 = vpop.f32.mrf.mxu0
        %v699 = vadd.f32 %v576, %v698
        %v700 = vpop.f32.mrf.mxu0
        %701 = vmatprep.mubr.f32.mxu0 0.0
        %702 = vmatmul.mubr.f32.gmra.mxu0 %v598
        %v703 = vpop.f32.mrf.mxu0
        %v704 = vadd.f32 %v576, %v703
        %v705 = vpop.f32.mrf.mxu0
        %706 = vmatprep.mubr.f32.mxu0 0.0
        %707 = vmatmul.mubr.f32.gmra.mxu0 %v601
        %v708 = vpop.f32.mrf.mxu0
        %v709 = vadd.f32 %v576, %v708
        %v710 = vpop.f32.mrf.mxu0
        %711 = vdwg.mxu0
        %712 = vst [vmem:[%s242] sm:$0xff] %v674
        %713 = vst [vmem:[%s242 + $0x8] sm:$0xff] %v679
        %714 = vst [vmem:[%s242 + $0x10] sm:$0xff] %v684
        %715 = vst [vmem:[%s242 + $0x18] sm:$0xff] %v689
        %716 = vst [vmem:[%s242 + $0x20] sm:$0xff] %v694
        %717 = vst [vmem:[%s242 + $0x28] sm:$0xff] %v699
        %718 = vst [vmem:[%s242 + $0x30] sm:$0xff] %v704
        %719 = vst [vmem:[%s242 + $0x38] sm:$0xff] %v709
        %s720 = sand.u32 %s138, 1
        %s721 = scalar_lea.sflag [#allocation4], %s720
        %s722 = sand.u32 %s138, 1
        %s723 = smul.addr %s722, 64
        %s724 = scalar_lea.vmem [#allocation3], %s723
        // Predicated region
        $region37: #{tpu_custom_call.1} parent=35 // pred_check
          %p725 = pneg %p148
        $region38: #{tpu_custom_call.1} parent=35 // pred_check_branch
          %727 = sbr.rel (%p725) target = $region40
        $region39: #{tpu_custom_call.1} parent=35 // pred_region
          %s728 = smul.u32 8, %s23
          %s730 = ssub.s32 1024, 1024
          %731 = vsyncadd %s721, %s730
          %s732 = smul.addr %s22, 8
          %s733 = sadd.s32 %s728, %s732
          %s734 = smul.addr %s733, 128
          %s735 = scalar_lea.hbm %s4, %s734
          %s736 = sshll.u32 %s724, 4
          %s737 = int_to_ptr.vmem [resolvable:$true] %s736
          %742 = dma.vmem_to_hbm [thread:$0]  %s737, 1024, %s735, %s721, 128, 128, 8
        $region40: #{tpu_custom_call.1} parent=35 // pred_fallthru
          _
      $region36: #{tpu_custom_call.1} parent=5 // pred_fallthru
        _
      %p743 = scmp.le.s32.totalorder 2, %s13
      // Predicated region
      $region41: #{tpu_custom_call.1} parent=5 // pred_check
        %p744 = pneg %p743
      $region42: #{tpu_custom_call.1} parent=5 // pred_check_branch
        %746 = sbr.rel (%p744) target = $region44
      $region43: #{tpu_custom_call.1} parent=5 // pred_region
        %s747 = ssub.s32 %s13, 2
        // Predicated region
        $region45: #{tpu_custom_call.1} parent=43 // pred_check
          %p748 = pneg %p154
        $region46: #{tpu_custom_call.1} parent=43 // pred_check_branch
          %750 = sbr.rel (%p748) target = $region48
        $region47: #{tpu_custom_call.1} parent=43 // pred_region
          %s751 = sand.u32 %s139, 1
          %s752 = scalar_lea.sflag [#allocation4], %s751
          %s753 = sand.u32 %s139, 1
          %s754 = smul.addr %s753, 64
          %s755 = scalar_lea.vmem [#allocation3], %s754
          %756 = dma.done %s752, 1024
        $region48: #{tpu_custom_call.1} parent=43 // pred_fallthru
          _
      $region44: #{tpu_custom_call.1} parent=5 // pred_fallthru
        _
    $region6: #{tpu_custom_call.1} parent=1 // loop_footer
      %s17 = sadd.s32 1, %s13
    $region7: #{tpu_custom_call.1} parent=1 // loop_footer_branch
      %12 = sbr.rel target = $region3
    $region8: #{tpu_custom_call.1} parent=1 // loop_exit
      _
    %757 = vsyncpa [#allocation4], 1
    %s758 = scalar_lea.sflag [#allocation4], 1
    %759 = vsyncpa %s758, 1

</llo_original>
